<compile_context>
chip_gen: v7x
topology: tpu7x:2x2x1
jax: 0.10.0
libtpu: 0.0.40
codegen_flags: <defaults>
</compile_context>

<pallas_src>
import jax
import jax.numpy as jnp
from jax.experimental import pallas as pl
from jax.experimental.pallas import tpu as pltpu


# ---------------------------------------------------------------------------
# Kernel
# ---------------------------------------------------------------------------
def gru_forward_kernel(
    x_ref,       # (T, Bp, I)   time-major embedded sequence
    wih_ref,     # (I, 3Hp)     W_ih^T, gate order [r, z, n], per-gate padded
    whh_ref,     # (Hp, 3Hp)    W_hh^T, per-gate padded
    bgi_ref,     # (1, 3Hp)     b_ih + [b_hr, b_hz, 0]  (folded input bias)
    bhn_ref,     # (1, Hp)      b_hn (must stay inside loop: scaled by r)
    wout_ref,    # (Hp, Op)     W_out^T
    bout_ref,    # (1, Op)
    out_ref,     # (Bp, Op)     logits (padded)
    gi_scratch,  # (T, Bp, 3Hp) VMEM scratch: precomputed input projections
):
    T, B, I = x_ref.shape
    Hp = bhn_ref.shape[1]

    # ---- Phase 1: one big MXU matmul for ALL time steps (hoisted out of the
    # serial recurrence), biases folded in.
    x2d = x_ref[...].reshape(T * B, I)                       # merge leading dims
    gi = jnp.dot(x2d, wih_ref[...], preferred_element_type=jnp.float32)
    gi = gi + bgi_ref[...]
    gi_scratch[...] = gi.reshape(T, B, 3 * Hp)

    # Hoist the (1,Hp)->(B,Hp) bias broadcast out of the time loop
    # (JAX does not CSE broadcast_in_dim).
    b_hn = jnp.broadcast_to(bhn_ref[...], (B, Hp))

    # ---- Phase 2: sequential recurrence. Only h_prev @ W_hh^T remains here.
    def step(t, h_prev):
        gi_t = gi_scratch[t]                                 # (B, 3Hp), 128-aligned slices
        gh = jnp.dot(h_prev, whh_ref[...],
                     preferred_element_type=jnp.float32)     # (B, 3Hp)
        r = jax.nn.sigmoid(gi_t[:, :Hp] + gh[:, :Hp])
        z = jax.nn.sigmoid(gi_t[:, Hp:2 * Hp] + gh[:, Hp:2 * Hp])
        n = jnp.tanh(gi_t[:, 2 * Hp:] + r * (gh[:, 2 * Hp:] + b_hn))
        return (1.0 - z) * n + z * h_prev

    h0 = jnp.zeros((B, Hp), jnp.float32)
    h_last = jax.lax.fori_loop(0, T, step, h0, unroll=(T <= 16))

    # ---- Phase 3: dropout is identity in eval mode; final Linear.
    # TODO(synk): training-mode dropout (mask + 1/(1-p) scale) not implemented.
    logits = jnp.dot(h_last, wout_ref[...],
                     preferred_element_type=jnp.float32) + bout_ref[...]
    out_ref[...] = logits.astype(out_ref.dtype)


# ---------------------------------------------------------------------------
# Wrapper
# ---------------------------------------------------------------------------
def _round_up(x, m):
    return ((x + m - 1) // m) * m


def _pad_axis(a, axis, new_size):
    pad = [(0, 0)] * a.ndim
    pad[axis] = (0, new_size - a.shape[axis])
    return jnp.pad(a, pad)


def _pad_gate_dim(w, H, Hp):
    """Pad the trailing concatenated-gates dim (3H) to (3Hp), per gate."""
    lead = w.shape[:-1]
    w3 = w.reshape(lead + (3, H))
    pad = [(0, 0)] * (len(lead) + 1) + [(0, Hp - H)]
    return jnp.pad(w3, pad).reshape(lead + (3 * Hp,))


def model_forward(tokens, params):
    """tokens: int32 (B, T). Returns logits (B, output_size)."""
    emb = params["embedding"]                 # (vocab, I)
    B, T = tokens.shape
    I = emb.shape[1]
    H = params["w_hh_t"].shape[0]
    O = params["w_out_t"].shape[1]

    Hp = _round_up(H, 128)                    # lane-aligned hidden width
    Op = _round_up(O, 128)                    # lane-dense output store
    Bp = _round_up(B, 8)                      # sublane-aligned batch

    # Gather embeddings directly in time-major order (no separate HBM
    # transpose pass over the embedded sequence).
    # TODO(synk): fuse the gather into the kernel via scalar-prefetched token
    # ids + pl.Element BlockSpec for large vocab / long sequences.
    tokens_tm = tokens.T                      # (T, B)   tiny int transpose
    if Bp != B:
        tokens_tm = jnp.pad(tokens_tm, ((0, 0), (0, Bp - B)))
    x_tm = jnp.take(emb, tokens_tm, axis=0)   # (T, Bp, I)

    # Pad weights to (8,128)-aligned tiles and fold biases.
    w_ih_p = _pad_gate_dim(params["w_ih_t"], H, Hp)          # (I, 3Hp)
    w_hh_p = _pad_axis(_pad_gate_dim(params["w_hh_t"], H, Hp), 0, Hp)  # (Hp, 3Hp)

    b_ih, b_hh = params["b_ih"], params["b_hh"]              # (1, 3H) each
    b_hr, b_hz, b_hn = b_hh[:, :H], b_hh[:, H:2 * H], b_hh[:, 2 * H:]
    # b_ih (all gates) + b_hh (r,z only) folded into the precomputed gi;
    # b_hn cannot be folded because it is multiplied by r inside the loop.
    b_gi = b_ih + jnp.concatenate([b_hr, b_hz, jnp.zeros_like(b_hn)], axis=1)
    b_gi_p = _pad_gate_dim(b_gi, H, Hp)                      # (1, 3Hp)
    b_hn_p = _pad_axis(b_hn, 1, Hp)                          # (1, Hp)

    w_out_p = _pad_axis(_pad_axis(params["w_out_t"], 0, Hp), 1, Op)  # (Hp, Op)
    b_out_p = _pad_axis(params["b_out"], 1, Op)                      # (1, Op)

    grid_spec = pltpu.PrefetchScalarGridSpec(
        num_scalar_prefetch=0,
        grid=(1,),  # single invocation; time loop runs inside the kernel
        in_specs=[
            pl.BlockSpec((T, Bp, I), lambda i: (0, 0, 0)),
            pl.BlockSpec((I, 3 * Hp), lambda i: (0, 0)),
            pl.BlockSpec((Hp, 3 * Hp), lambda i: (0, 0)),
            pl.BlockSpec((1, 3 * Hp), lambda i: (0, 0)),
            pl.BlockSpec((1, Hp), lambda i: (0, 0)),
            pl.BlockSpec((Hp, Op), lambda i: (0, 0)),
            pl.BlockSpec((1, Op), lambda i: (0, 0)),
        ],
        out_specs=pl.BlockSpec((Bp, Op), lambda i: (0, 0)),
        scratch_shapes=[pltpu.VMEM((T, Bp, 3 * Hp), jnp.float32)],
    )

    out_padded = pl.pallas_call(
        gru_forward_kernel,
        out_shape=jax.ShapeDtypeStruct((Bp, Op), jnp.float32),
        grid_spec=grid_spec,
        compiler_params=pltpu.CompilerParams(
            dimension_semantics=("arbitrary",),
        ),
    )(x_tm, w_ih_p, w_hh_p, b_gi_p, b_hn_p, w_out_p, b_out_p)

    return out_padded[:B, :O]


# ---------------------------------------------------------------------------
# Pure-JAX reference (PyTorch nn.GRU semantics) for correctness check
# ---------------------------------------------------------------------------
def model_forward_ref(tokens, params):
    emb = params["embedding"]
    x = jnp.take(emb, tokens, axis=0)                        # (B, T, I)
    B = x.shape[0]
    H = params["w_hh_t"].shape[0]
    w_ih_t, w_hh_t = params["w_ih_t"], params["w_hh_t"]
    b_ih, b_hh = params["b_ih"], params["b_hh"]

    def step(h, x_t):
        gi = x_t @ w_ih_t + b_ih
        gh = h @ w_hh_t + b_hh
        i_r, i_z, i_n = gi[:, :H], gi[:, H:2 * H], gi[:, 2 * H:]
        h_r, h_z, h_n = gh[:, :H], gh[:, H:2 * H], gh[:, 2 * H:]
        r = jax.nn.sigmoid(i_r + h_r)
        z = jax.nn.sigmoid(i_z + h_z)
        n = jnp.tanh(i_n + r * h_n)
        return (1.0 - z) * n + z * h, None

    h0 = jnp.zeros((B, H), jnp.float32)
    h_last, _ = jax.lax.scan(step, h0, jnp.transpose(x, (1, 0, 2)))
    return h_last @ params["w_out_t"] + params["b_out"]


# ---------------------------------------------------------------------------
# Params / main
# ---------------------------------------------------------------------------
def init_params(key, vocab_size, input_size, hidden_size, output_size):
    k = jax.random.split(key, 7)
    scale = 0.1
    return {
        "embedding": scale * jax.random.normal(k[0], (vocab_size, input_size), jnp.float32),
        # PyTorch stores (3H, I) / (3H, H); we keep the transposes for the kernel.
        "w_ih_t": scale * jax.random.normal(k[1], (input_size, 3 * hidden_size), jnp.float32),
        "w_hh_t": scale * jax.random.normal(k[2], (hidden_size, 3 * hidden_size), jnp.float32),
        "b_ih": scale * jax.random.normal(k[3], (1, 3 * hidden_size), jnp.float32),
        "b_hh": scale * jax.random.normal(k[4], (1, 3 * hidden_size), jnp.float32),
        "w_out_t": scale * jax.random.normal(k[5], (hidden_size, output_size), jnp.float32),
        "b_out": scale * jax.random.normal(k[6], (1, output_size), jnp.float32),
    }


if __name__ == "__main__":
    vocab_size, input_size, hidden_size, output_size = 32, 16, 32, 10
    B, T = 2, 8

    key = jax.random.PRNGKey(0)
    pkey, tkey = jax.random.split(key)
    params = init_params(pkey, vocab_size, input_size, hidden_size, output_size)
    tokens = jax.random.randint(tkey, (B, T), 0, vocab_size, dtype=jnp.int32)

    logits = model_forward(tokens, params)
    jax.block_until_ready(logits)
    assert logits.shape == (B, output_size)

    ref = model_forward_ref(tokens, params)
    assert jnp.allclose(logits, ref, atol=1e-2, rtol=1e-2), float(
        jnp.max(jnp.abs(logits - ref)))

    print("KERNEL_OK")
</pallas_src>

<mosaic_0001>
module attributes {stable_mosaic.version = 11 : i64} {
  func.func @gru_forward_kernel(%arg0: i32, %arg1: memref<8x8x16xf32, #tpu.memory_space<vmem>>, %arg2: memref<16x384xf32, #tpu.memory_space<vmem>>, %arg3: memref<128x384xf32, #tpu.memory_space<vmem>>, %arg4: memref<1x384xf32, #tpu.memory_space<vmem>>, %arg5: memref<1x128xf32, #tpu.memory_space<vmem>>, %arg6: memref<128x128xf32, #tpu.memory_space<vmem>>, %arg7: memref<1x128xf32, #tpu.memory_space<vmem>>, %arg8: memref<8x128xf32, #tpu.memory_space<vmem>>, %arg9: memref<8x8x384xf32, #tpu.memory_space<vmem>>) attributes {dimension_semantics = [#tpu.dimension_semantics<arbitrary>], iteration_bounds = array<i64: 1>, scalar_prefetch = 0 : i64, scratch_operands = 1 : i64, tpu.core_type = #tpu.core_type<tc>, window_params = [{pipeline_mode = #tpu.pipeline_mode<synchronous>, transform_indices = @transform_0, window_bounds = array<i64: 8, 8, 16>}, {pipeline_mode = #tpu.pipeline_mode<synchronous>, transform_indices = @transform_1, window_bounds = array<i64: 16, 384>}, {pipeline_mode = #tpu.pipeline_mode<synchronous>, transform_indices = @transform_2, window_bounds = array<i64: 128, 384>}, {pipeline_mode = #tpu.pipeline_mode<synchronous>, transform_indices = @transform_3, window_bounds = array<i64: 1, 384>}, {pipeline_mode = #tpu.pipeline_mode<synchronous>, transform_indices = @transform_4, window_bounds = array<i64: 1, 128>}, {pipeline_mode = #tpu.pipeline_mode<synchronous>, transform_indices = @transform_5, window_bounds = array<i64: 128, 128>}, {pipeline_mode = #tpu.pipeline_mode<synchronous>, transform_indices = @transform_6, window_bounds = array<i64: 1, 128>}, {pipeline_mode = #tpu.pipeline_mode<synchronous>, transform_indices = @transform_7, window_bounds = array<i64: 8, 128>}]} {
    %c0 = arith.constant 0 : index
    %c0_0 = arith.constant 0 : index
    %c0_1 = arith.constant 0 : index
    %0 = vector.load %arg1[%c0, %c0_0, %c0_1] : memref<8x8x16xf32, #tpu.memory_space<vmem>>, vector<8x8x16xf32>
    %1 = vector.shape_cast %0 : vector<8x8x16xf32> to vector<64x16xf32>
    %c0_2 = arith.constant 0 : index
    %c0_3 = arith.constant 0 : index
    %2 = vector.load %arg2[%c0_2, %c0_3] : memref<16x384xf32, #tpu.memory_space<vmem>>, vector<16x384xf32>
    %cst = arith.constant dense<0.000000e+00> : vector<64x384xf32>
    %3 = tpu.matmul %1, %2, %cst {dimension_numbers = #tpu.dot_dimension_numbers<[1], [0], [0], [1], [0, 0, 1, 1], [], []>} : vector<64x16xf32>, vector<16x384xf32>, vector<64x384xf32> -> vector<64x384xf32>
    %c0_4 = arith.constant 0 : index
    %c0_5 = arith.constant 0 : index
    %4 = vector.load %arg4[%c0_4, %c0_5] : memref<1x384xf32, #tpu.memory_space<vmem>>, vector<1x384xf32>
    %5 = vector.broadcast %4 : vector<1x384xf32> to vector<64x384xf32>
    %6 = arith.addf %3, %5 : vector<64x384xf32>
    %7 = vector.shape_cast %6 : vector<64x384xf32> to vector<8x8x384xf32>
    %c0_6 = arith.constant 0 : index
    %c0_7 = arith.constant 0 : index
    %c0_8 = arith.constant 0 : index
    %8 = vector.load %arg9[%c0_6, %c0_7, %c0_8] : memref<8x8x384xf32, #tpu.memory_space<vmem>>, vector<8x8x384xf32>
    tpu.vector_store %arg9[%c0_6, %c0_7, %c0_8], %7 {strides = array<i32>} : memref<8x8x384xf32, #tpu.memory_space<vmem>>, vector<8x8x384xf32>,
    %c0_9 = arith.constant 0 : index
    %c0_10 = arith.constant 0 : index
    %9 = vector.load %arg5[%c0_9, %c0_10] : memref<1x128xf32, #tpu.memory_space<vmem>>, vector<1x128xf32>
    %10 = vector.shape_cast %9 : vector<1x128xf32> to vector<1x128xf32>
    %11 = vector.broadcast %10 : vector<1x128xf32> to vector<8x128xf32>
    %cst_11 = arith.constant 0.000000e+00 : f32
    %12 = vector.broadcast %cst_11 : f32 to vector<8x128xf32>
    %c0_i32 = arith.constant 0 : i32
    %13 = arith.index_cast %c0_i32 : i32 to index
    %c0_12 = arith.constant 0 : index
    %c0_13 = arith.constant 0 : index
    %14 = vector.load %arg9[%13, %c0_12, %c0_13] : memref<8x8x384xf32, #tpu.memory_space<vmem>>, vector<1x8x384xf32>
    %15 = vector.shape_cast %14 : vector<1x8x384xf32> to vector<8x384xf32>
    %c0_14 = arith.constant 0 : index
    %c0_15 = arith.constant 0 : index
    %16 = vector.load %arg3[%c0_14, %c0_15] : memref<128x384xf32, #tpu.memory_space<vmem>>, vector<128x384xf32>
    %cst_16 = arith.constant dense<0.000000e+00> : vector<8x384xf32>
    %17 = tpu.matmul %12, %16, %cst_16 {dimension_numbers = #tpu.dot_dimension_numbers<[1], [0], [0], [1], [0, 0, 1, 1], [], []>} : vector<8x128xf32>, vector<128x384xf32>, vector<8x384xf32> -> vector<8x384xf32>
    %18 = vector.extract_strided_slice %15 {offsets = [0, 0], sizes = [8, 128], strides = [1, 1]} : vector<8x384xf32> to vector<8x128xf32>
    %19 = vector.extract_strided_slice %17 {offsets = [0, 0], sizes = [8, 128], strides = [1, 1]} : vector<8x384xf32> to vector<8x128xf32>
    %20 = arith.addf %18, %19 : vector<8x128xf32>
    %21 = arith.negf %20 : vector<8x128xf32>
    %22 = math.exp %21 : vector<8x128xf32>
    %cst_17 = arith.constant 1.000000e+00 : f32
    %23 = vector.broadcast %cst_17 : f32 to vector<8x128xf32>
    %24 = arith.addf %23, %22 : vector<8x128xf32>
    %25 = arith.divf %23, %24 : vector<8x128xf32>
    %26 = vector.extract_strided_slice %15 {offsets = [0, 128], sizes = [8, 128], strides = [1, 1]} : vector<8x384xf32> to vector<8x128xf32>
    %27 = vector.extract_strided_slice %17 {offsets = [0, 128], sizes = [8, 128], strides = [1, 1]} : vector<8x384xf32> to vector<8x128xf32>
    %28 = arith.addf %26, %27 : vector<8x128xf32>
    %29 = arith.negf %28 : vector<8x128xf32>
    %30 = math.exp %29 : vector<8x128xf32>
    %cst_18 = arith.constant 1.000000e+00 : f32
    %31 = vector.broadcast %cst_18 : f32 to vector<8x128xf32>
    %32 = arith.addf %31, %30 : vector<8x128xf32>
    %33 = arith.divf %31, %32 : vector<8x128xf32>
    %34 = vector.extract_strided_slice %15 {offsets = [0, 256], sizes = [8, 128], strides = [1, 1]} : vector<8x384xf32> to vector<8x128xf32>
    %35 = vector.extract_strided_slice %17 {offsets = [0, 256], sizes = [8, 128], strides = [1, 1]} : vector<8x384xf32> to vector<8x128xf32>
    %36 = arith.addf %35, %11 : vector<8x128xf32>
    %37 = arith.mulf %25, %36 : vector<8x128xf32>
    %38 = arith.addf %34, %37 : vector<8x128xf32>
    %39 = math.tanh %38 : vector<8x128xf32>
    %cst_19 = arith.constant 1.000000e+00 : f32
    %40 = vector.broadcast %cst_19 : f32 to vector<8x128xf32>
    %41 = arith.subf %40, %33 : vector<8x128xf32>
    %42 = arith.mulf %41, %39 : vector<8x128xf32>
    %43 = arith.mulf %33, %12 : vector<8x128xf32>
    %44 = arith.addf %42, %43 : vector<8x128xf32>
    %c1_i32 = arith.constant 1 : i32
    %45 = arith.index_cast %c1_i32 : i32 to index
    %c0_20 = arith.constant 0 : index
    %c0_21 = arith.constant 0 : index
    %46 = vector.load %arg9[%45, %c0_20, %c0_21] : memref<8x8x384xf32, #tpu.memory_space<vmem>>, vector<1x8x384xf32>
    %47 = vector.shape_cast %46 : vector<1x8x384xf32> to vector<8x384xf32>
    %c0_22 = arith.constant 0 : index
    %c0_23 = arith.constant 0 : index
    %48 = vector.load %arg3[%c0_22, %c0_23] : memref<128x384xf32, #tpu.memory_space<vmem>>, vector<128x384xf32>
    %cst_24 = arith.constant dense<0.000000e+00> : vector<8x384xf32>
    %49 = tpu.matmul %44, %48, %cst_24 {dimension_numbers = #tpu.dot_dimension_numbers<[1], [0], [0], [1], [0, 0, 1, 1], [], []>} : vector<8x128xf32>, vector<128x384xf32>, vector<8x384xf32> -> vector<8x384xf32>
    %50 = vector.extract_strided_slice %47 {offsets = [0, 0], sizes = [8, 128], strides = [1, 1]} : vector<8x384xf32> to vector<8x128xf32>
    %51 = vector.extract_strided_slice %49 {offsets = [0, 0], sizes = [8, 128], strides = [1, 1]} : vector<8x384xf32> to vector<8x128xf32>
    %52 = arith.addf %50, %51 : vector<8x128xf32>
    %53 = arith.negf %52 : vector<8x128xf32>
    %54 = math.exp %53 : vector<8x128xf32>
    %cst_25 = arith.constant 1.000000e+00 : f32
    %55 = vector.broadcast %cst_25 : f32 to vector<8x128xf32>
    %56 = arith.addf %55, %54 : vector<8x128xf32>
    %57 = arith.divf %55, %56 : vector<8x128xf32>
    %58 = vector.extract_strided_slice %47 {offsets = [0, 128], sizes = [8, 128], strides = [1, 1]} : vector<8x384xf32> to vector<8x128xf32>
    %59 = vector.extract_strided_slice %49 {offsets = [0, 128], sizes = [8, 128], strides = [1, 1]} : vector<8x384xf32> to vector<8x128xf32>
    %60 = arith.addf %58, %59 : vector<8x128xf32>
    %61 = arith.negf %60 : vector<8x128xf32>
    %62 = math.exp %61 : vector<8x128xf32>
    %cst_26 = arith.constant 1.000000e+00 : f32
    %63 = vector.broadcast %cst_26 : f32 to vector<8x128xf32>
    %64 = arith.addf %63, %62 : vector<8x128xf32>
    %65 = arith.divf %63, %64 : vector<8x128xf32>
    %66 = vector.extract_strided_slice %47 {offsets = [0, 256], sizes = [8, 128], strides = [1, 1]} : vector<8x384xf32> to vector<8x128xf32>
    %67 = vector.extract_strided_slice %49 {offsets = [0, 256], sizes = [8, 128], strides = [1, 1]} : vector<8x384xf32> to vector<8x128xf32>
    %68 = arith.addf %67, %11 : vector<8x128xf32>
    %69 = arith.mulf %57, %68 : vector<8x128xf32>
    %70 = arith.addf %66, %69 : vector<8x128xf32>
    %71 = math.tanh %70 : vector<8x128xf32>
    %cst_27 = arith.constant 1.000000e+00 : f32
    %72 = vector.broadcast %cst_27 : f32 to vector<8x128xf32>
    %73 = arith.subf %72, %65 : vector<8x128xf32>
    %74 = arith.mulf %73, %71 : vector<8x128xf32>
    %75 = arith.mulf %65, %44 : vector<8x128xf32>
    %76 = arith.addf %74, %75 : vector<8x128xf32>
    %c2_i32 = arith.constant 2 : i32
    %77 = arith.index_cast %c2_i32 : i32 to index
    %c0_28 = arith.constant 0 : index
    %c0_29 = arith.constant 0 : index
    %78 = vector.load %arg9[%77, %c0_28, %c0_29] : memref<8x8x384xf32, #tpu.memory_space<vmem>>, vector<1x8x384xf32>
    %79 = vector.shape_cast %78 : vector<1x8x384xf32> to vector<8x384xf32>
    %c0_30 = arith.constant 0 : index
    %c0_31 = arith.constant 0 : index
    %80 = vector.load %arg3[%c0_30, %c0_31] : memref<128x384xf32, #tpu.memory_space<vmem>>, vector<128x384xf32>
    %cst_32 = arith.constant dense<0.000000e+00> : vector<8x384xf32>
    %81 = tpu.matmul %76, %80, %cst_32 {dimension_numbers = #tpu.dot_dimension_numbers<[1], [0], [0], [1], [0, 0, 1, 1], [], []>} : vector<8x128xf32>, vector<128x384xf32>, vector<8x384xf32> -> vector<8x384xf32>
    %82 = vector.extract_strided_slice %79 {offsets = [0, 0], sizes = [8, 128], strides = [1, 1]} : vector<8x384xf32> to vector<8x128xf32>
    %83 = vector.extract_strided_slice %81 {offsets = [0, 0], sizes = [8, 128], strides = [1, 1]} : vector<8x384xf32> to vector<8x128xf32>
    %84 = arith.addf %82, %83 : vector<8x128xf32>
    %85 = arith.negf %84 : vector<8x128xf32>
    %86 = math.exp %85 : vector<8x128xf32>
    %cst_33 = arith.constant 1.000000e+00 : f32
    %87 = vector.broadcast %cst_33 : f32 to vector<8x128xf32>
    %88 = arith.addf %87, %86 : vector<8x128xf32>
    %89 = arith.divf %87, %88 : vector<8x128xf32>
    %90 = vector.extract_strided_slice %79 {offsets = [0, 128], sizes = [8, 128], strides = [1, 1]} : vector<8x384xf32> to vector<8x128xf32>
    %91 = vector.extract_strided_slice %81 {offsets = [0, 128], sizes = [8, 128], strides = [1, 1]} : vector<8x384xf32> to vector<8x128xf32>
    %92 = arith.addf %90, %91 : vector<8x128xf32>
    %93 = arith.negf %92 : vector<8x128xf32>
    %94 = math.exp %93 : vector<8x128xf32>
    %cst_34 = arith.constant 1.000000e+00 : f32
    %95 = vector.broadcast %cst_34 : f32 to vector<8x128xf32>
    %96 = arith.addf %95, %94 : vector<8x128xf32>
    %97 = arith.divf %95, %96 : vector<8x128xf32>
    %98 = vector.extract_strided_slice %79 {offsets = [0, 256], sizes = [8, 128], strides = [1, 1]} : vector<8x384xf32> to vector<8x128xf32>
    %99 = vector.extract_strided_slice %81 {offsets = [0, 256], sizes = [8, 128], strides = [1, 1]} : vector<8x384xf32> to vector<8x128xf32>
    %100 = arith.addf %99, %11 : vector<8x128xf32>
    %101 = arith.mulf %89, %100 : vector<8x128xf32>
    %102 = arith.addf %98, %101 : vector<8x128xf32>
    %103 = math.tanh %102 : vector<8x128xf32>
    %cst_35 = arith.constant 1.000000e+00 : f32
    %104 = vector.broadcast %cst_35 : f32 to vector<8x128xf32>
    %105 = arith.subf %104, %97 : vector<8x128xf32>
    %106 = arith.mulf %105, %103 : vector<8x128xf32>
    %107 = arith.mulf %97, %76 : vector<8x128xf32>
    %108 = arith.addf %106, %107 : vector<8x128xf32>
    %c3_i32 = arith.constant 3 : i32
    %109 = arith.index_cast %c3_i32 : i32 to index
    %c0_36 = arith.constant 0 : index
    %c0_37 = arith.constant 0 : index
    %110 = vector.load %arg9[%109, %c0_36, %c0_37] : memref<8x8x384xf32, #tpu.memory_space<vmem>>, vector<1x8x384xf32>
    %111 = vector.shape_cast %110 : vector<1x8x384xf32> to vector<8x384xf32>
    %c0_38 = arith.constant 0 : index
    %c0_39 = arith.constant 0 : index
    %112 = vector.load %arg3[%c0_38, %c0_39] : memref<128x384xf32, #tpu.memory_space<vmem>>, vector<128x384xf32>
    %cst_40 = arith.constant dense<0.000000e+00> : vector<8x384xf32>
    %113 = tpu.matmul %108, %112, %cst_40 {dimension_numbers = #tpu.dot_dimension_numbers<[1], [0], [0], [1], [0, 0, 1, 1], [], []>} : vector<8x128xf32>, vector<128x384xf32>, vector<8x384xf32> -> vector<8x384xf32>
    %114 = vector.extract_strided_slice %111 {offsets = [0, 0], sizes = [8, 128], strides = [1, 1]} : vector<8x384xf32> to vector<8x128xf32>
    %115 = vector.extract_strided_slice %113 {offsets = [0, 0], sizes = [8, 128], strides = [1, 1]} : vector<8x384xf32> to vector<8x128xf32>
    %116 = arith.addf %114, %115 : vector<8x128xf32>
    %117 = arith.negf %116 : vector<8x128xf32>
    %118 = math.exp %117 : vector<8x128xf32>
    %cst_41 = arith.constant 1.000000e+00 : f32
    %119 = vector.broadcast %cst_41 : f32 to vector<8x128xf32>
    %120 = arith.addf %119, %118 : vector<8x128xf32>
    %121 = arith.divf %119, %120 : vector<8x128xf32>
    %122 = vector.extract_strided_slice %111 {offsets = [0, 128], sizes = [8, 128], strides = [1, 1]} : vector<8x384xf32> to vector<8x128xf32>
    %123 = vector.extract_strided_slice %113 {offsets = [0, 128], sizes = [8, 128], strides = [1, 1]} : vector<8x384xf32> to vector<8x128xf32>
    %124 = arith.addf %122, %123 : vector<8x128xf32>
    %125 = arith.negf %124 : vector<8x128xf32>
    %126 = math.exp %125 : vector<8x128xf32>
    %cst_42 = arith.constant 1.000000e+00 : f32
    %127 = vector.broadcast %cst_42 : f32 to vector<8x128xf32>
    %128 = arith.addf %127, %126 : vector<8x128xf32>
    %129 = arith.divf %127, %128 : vector<8x128xf32>
    %130 = vector.extract_strided_slice %111 {offsets = [0, 256], sizes = [8, 128], strides = [1, 1]} : vector<8x384xf32> to vector<8x128xf32>
    %131 = vector.extract_strided_slice %113 {offsets = [0, 256], sizes = [8, 128], strides = [1, 1]} : vector<8x384xf32> to vector<8x128xf32>
    %132 = arith.addf %131, %11 : vector<8x128xf32>
    %133 = arith.mulf %121, %132 : vector<8x128xf32>
    %134 = arith.addf %130, %133 : vector<8x128xf32>
    %135 = math.tanh %134 : vector<8x128xf32>
    %cst_43 = arith.constant 1.000000e+00 : f32
    %136 = vector.broadcast %cst_43 : f32 to vector<8x128xf32>
    %137 = arith.subf %136, %129 : vector<8x128xf32>
    %138 = arith.mulf %137, %135 : vector<8x128xf32>
    %139 = arith.mulf %129, %108 : vector<8x128xf32>
    %140 = arith.addf %138, %139 : vector<8x128xf32>
    %c4_i32 = arith.constant 4 : i32
    %141 = arith.index_cast %c4_i32 : i32 to index
    %c0_44 = arith.constant 0 : index
    %c0_45 = arith.constant 0 : index
    %142 = vector.load %arg9[%141, %c0_44, %c0_45] : memref<8x8x384xf32, #tpu.memory_space<vmem>>, vector<1x8x384xf32>
    %143 = vector.shape_cast %142 : vector<1x8x384xf32> to vector<8x384xf32>
    %c0_46 = arith.constant 0 : index
    %c0_47 = arith.constant 0 : index
    %144 = vector.load %arg3[%c0_46, %c0_47] : memref<128x384xf32, #tpu.memory_space<vmem>>, vector<128x384xf32>
    %cst_48 = arith.constant dense<0.000000e+00> : vector<8x384xf32>
    %145 = tpu.matmul %140, %144, %cst_48 {dimension_numbers = #tpu.dot_dimension_numbers<[1], [0], [0], [1], [0, 0, 1, 1], [], []>} : vector<8x128xf32>, vector<128x384xf32>, vector<8x384xf32> -> vector<8x384xf32>
    %146 = vector.extract_strided_slice %143 {offsets = [0, 0], sizes = [8, 128], strides = [1, 1]} : vector<8x384xf32> to vector<8x128xf32>
    %147 = vector.extract_strided_slice %145 {offsets = [0, 0], sizes = [8, 128], strides = [1, 1]} : vector<8x384xf32> to vector<8x128xf32>
    %148 = arith.addf %146, %147 : vector<8x128xf32>
    %149 = arith.negf %148 : vector<8x128xf32>
    %150 = math.exp %149 : vector<8x128xf32>
    %cst_49 = arith.constant 1.000000e+00 : f32
    %151 = vector.broadcast %cst_49 : f32 to vector<8x128xf32>
    %152 = arith.addf %151, %150 : vector<8x128xf32>
    %153 = arith.divf %151, %152 : vector<8x128xf32>
    %154 = vector.extract_strided_slice %143 {offsets = [0, 128], sizes = [8, 128], strides = [1, 1]} : vector<8x384xf32> to vector<8x128xf32>
    %155 = vector.extract_strided_slice %145 {offsets = [0, 128], sizes = [8, 128], strides = [1, 1]} : vector<8x384xf32> to vector<8x128xf32>
    %156 = arith.addf %154, %155 : vector<8x128xf32>
    %157 = arith.negf %156 : vector<8x128xf32>
    %158 = math.exp %157 : vector<8x128xf32>
    %cst_50 = arith.constant 1.000000e+00 : f32
    %159 = vector.broadcast %cst_50 : f32 to vector<8x128xf32>
    %160 = arith.addf %159, %158 : vector<8x128xf32>
    %161 = arith.divf %159, %160 : vector<8x128xf32>
    %162 = vector.extract_strided_slice %143 {offsets = [0, 256], sizes = [8, 128], strides = [1, 1]} : vector<8x384xf32> to vector<8x128xf32>
    %163 = vector.extract_strided_slice %145 {offsets = [0, 256], sizes = [8, 128], strides = [1, 1]} : vector<8x384xf32> to vector<8x128xf32>
    %164 = arith.addf %163, %11 : vector<8x128xf32>
    %165 = arith.mulf %153, %164 : vector<8x128xf32>
    %166 = arith.addf %162, %165 : vector<8x128xf32>
    %167 = math.tanh %166 : vector<8x128xf32>
    %cst_51 = arith.constant 1.000000e+00 : f32
    %168 = vector.broadcast %cst_51 : f32 to vector<8x128xf32>
    %169 = arith.subf %168, %161 : vector<8x128xf32>
    %170 = arith.mulf %169, %167 : vector<8x128xf32>
    %171 = arith.mulf %161, %140 : vector<8x128xf32>
    %172 = arith.addf %170, %171 : vector<8x128xf32>
    %c5_i32 = arith.constant 5 : i32
    %173 = arith.index_cast %c5_i32 : i32 to index
    %c0_52 = arith.constant 0 : index
    %c0_53 = arith.constant 0 : index
    %174 = vector.load %arg9[%173, %c0_52, %c0_53] : memref<8x8x384xf32, #tpu.memory_space<vmem>>, vector<1x8x384xf32>
    %175 = vector.shape_cast %174 : vector<1x8x384xf32> to vector<8x384xf32>
    %c0_54 = arith.constant 0 : index
    %c0_55 = arith.constant 0 : index
    %176 = vector.load %arg3[%c0_54, %c0_55] : memref<128x384xf32, #tpu.memory_space<vmem>>, vector<128x384xf32>
    %cst_56 = arith.constant dense<0.000000e+00> : vector<8x384xf32>
    %177 = tpu.matmul %172, %176, %cst_56 {dimension_numbers = #tpu.dot_dimension_numbers<[1], [0], [0], [1], [0, 0, 1, 1], [], []>} : vector<8x128xf32>, vector<128x384xf32>, vector<8x384xf32> -> vector<8x384xf32>
    %178 = vector.extract_strided_slice %175 {offsets = [0, 0], sizes = [8, 128], strides = [1, 1]} : vector<8x384xf32> to vector<8x128xf32>
    %179 = vector.extract_strided_slice %177 {offsets = [0, 0], sizes = [8, 128], strides = [1, 1]} : vector<8x384xf32> to vector<8x128xf32>
    %180 = arith.addf %178, %179 : vector<8x128xf32>
    %181 = arith.negf %180 : vector<8x128xf32>
    %182 = math.exp %181 : vector<8x128xf32>
    %cst_57 = arith.constant 1.000000e+00 : f32
    %183 = vector.broadcast %cst_57 : f32 to vector<8x128xf32>
    %184 = arith.addf %183, %182 : vector<8x128xf32>
    %185 = arith.divf %183, %184 : vector<8x128xf32>
    %186 = vector.extract_strided_slice %175 {offsets = [0, 128], sizes = [8, 128], strides = [1, 1]} : vector<8x384xf32> to vector<8x128xf32>
    %187 = vector.extract_strided_slice %177 {offsets = [0, 128], sizes = [8, 128], strides = [1, 1]} : vector<8x384xf32> to vector<8x128xf32>
    %188 = arith.addf %186, %187 : vector<8x128xf32>
    %189 = arith.negf %188 : vector<8x128xf32>
    %190 = math.exp %189 : vector<8x128xf32>
    %cst_58 = arith.constant 1.000000e+00 : f32
    %191 = vector.broadcast %cst_58 : f32 to vector<8x128xf32>
    %192 = arith.addf %191, %190 : vector<8x128xf32>
    %193 = arith.divf %191, %192 : vector<8x128xf32>
    %194 = vector.extract_strided_slice %175 {offsets = [0, 256], sizes = [8, 128], strides = [1, 1]} : vector<8x384xf32> to vector<8x128xf32>
    %195 = vector.extract_strided_slice %177 {offsets = [0, 256], sizes = [8, 128], strides = [1, 1]} : vector<8x384xf32> to vector<8x128xf32>
    %196 = arith.addf %195, %11 : vector<8x128xf32>
    %197 = arith.mulf %185, %196 : vector<8x128xf32>
    %198 = arith.addf %194, %197 : vector<8x128xf32>
    %199 = math.tanh %198 : vector<8x128xf32>
    %cst_59 = arith.constant 1.000000e+00 : f32
    %200 = vector.broadcast %cst_59 : f32 to vector<8x128xf32>
    %201 = arith.subf %200, %193 : vector<8x128xf32>
    %202 = arith.mulf %201, %199 : vector<8x128xf32>
    %203 = arith.mulf %193, %172 : vector<8x128xf32>
    %204 = arith.addf %202, %203 : vector<8x128xf32>
    %c6_i32 = arith.constant 6 : i32
    %205 = arith.index_cast %c6_i32 : i32 to index
    %c0_60 = arith.constant 0 : index
    %c0_61 = arith.constant 0 : index
    %206 = vector.load %arg9[%205, %c0_60, %c0_61] : memref<8x8x384xf32, #tpu.memory_space<vmem>>, vector<1x8x384xf32>
    %207 = vector.shape_cast %206 : vector<1x8x384xf32> to vector<8x384xf32>
    %c0_62 = arith.constant 0 : index
    %c0_63 = arith.constant 0 : index
    %208 = vector.load %arg3[%c0_62, %c0_63] : memref<128x384xf32, #tpu.memory_space<vmem>>, vector<128x384xf32>
    %cst_64 = arith.constant dense<0.000000e+00> : vector<8x384xf32>
    %209 = tpu.matmul %204, %208, %cst_64 {dimension_numbers = #tpu.dot_dimension_numbers<[1], [0], [0], [1], [0, 0, 1, 1], [], []>} : vector<8x128xf32>, vector<128x384xf32>, vector<8x384xf32> -> vector<8x384xf32>
    %210 = vector.extract_strided_slice %207 {offsets = [0, 0], sizes = [8, 128], strides = [1, 1]} : vector<8x384xf32> to vector<8x128xf32>
    %211 = vector.extract_strided_slice %209 {offsets = [0, 0], sizes = [8, 128], strides = [1, 1]} : vector<8x384xf32> to vector<8x128xf32>
    %212 = arith.addf %210, %211 : vector<8x128xf32>
    %213 = arith.negf %212 : vector<8x128xf32>
    %214 = math.exp %213 : vector<8x128xf32>
    %cst_65 = arith.constant 1.000000e+00 : f32
    %215 = vector.broadcast %cst_65 : f32 to vector<8x128xf32>
    %216 = arith.addf %215, %214 : vector<8x128xf32>
    %217 = arith.divf %215, %216 : vector<8x128xf32>
    %218 = vector.extract_strided_slice %207 {offsets = [0, 128], sizes = [8, 128], strides = [1, 1]} : vector<8x384xf32> to vector<8x128xf32>
    %219 = vector.extract_strided_slice %209 {offsets = [0, 128], sizes = [8, 128], strides = [1, 1]} : vector<8x384xf32> to vector<8x128xf32>
    %220 = arith.addf %218, %219 : vector<8x128xf32>
    %221 = arith.negf %220 : vector<8x128xf32>
    %222 = math.exp %221 : vector<8x128xf32>
    %cst_66 = arith.constant 1.000000e+00 : f32
    %223 = vector.broadcast %cst_66 : f32 to vector<8x128xf32>
    %224 = arith.addf %223, %222 : vector<8x128xf32>
    %225 = arith.divf %223, %224 : vector<8x128xf32>
    %226 = vector.extract_strided_slice %207 {offsets = [0, 256], sizes = [8, 128], strides = [1, 1]} : vector<8x384xf32> to vector<8x128xf32>
    %227 = vector.extract_strided_slice %209 {offsets = [0, 256], sizes = [8, 128], strides = [1, 1]} : vector<8x384xf32> to vector<8x128xf32>
    %228 = arith.addf %227, %11 : vector<8x128xf32>
    %229 = arith.mulf %217, %228 : vector<8x128xf32>
    %230 = arith.addf %226, %229 : vector<8x128xf32>
    %231 = math.tanh %230 : vector<8x128xf32>
    %cst_67 = arith.constant 1.000000e+00 : f32
    %232 = vector.broadcast %cst_67 : f32 to vector<8x128xf32>
    %233 = arith.subf %232, %225 : vector<8x128xf32>
    %234 = arith.mulf %233, %231 : vector<8x128xf32>
    %235 = arith.mulf %225, %204 : vector<8x128xf32>
    %236 = arith.addf %234, %235 : vector<8x128xf32>
    %c7_i32 = arith.constant 7 : i32
    %237 = arith.index_cast %c7_i32 : i32 to index
    %c0_68 = arith.constant 0 : index
    %c0_69 = arith.constant 0 : index
    %238 = vector.load %arg9[%237, %c0_68, %c0_69] : memref<8x8x384xf32, #tpu.memory_space<vmem>>, vector<1x8x384xf32>
    %239 = vector.shape_cast %238 : vector<1x8x384xf32> to vector<8x384xf32>
    %c0_70 = arith.constant 0 : index
    %c0_71 = arith.constant 0 : index
    %240 = vector.load %arg3[%c0_70, %c0_71] : memref<128x384xf32, #tpu.memory_space<vmem>>, vector<128x384xf32>
    %cst_72 = arith.constant dense<0.000000e+00> : vector<8x384xf32>
    %241 = tpu.matmul %236, %240, %cst_72 {dimension_numbers = #tpu.dot_dimension_numbers<[1], [0], [0], [1], [0, 0, 1, 1], [], []>} : vector<8x128xf32>, vector<128x384xf32>, vector<8x384xf32> -> vector<8x384xf32>
    %242 = vector.extract_strided_slice %239 {offsets = [0, 0], sizes = [8, 128], strides = [1, 1]} : vector<8x384xf32> to vector<8x128xf32>
    %243 = vector.extract_strided_slice %241 {offsets = [0, 0], sizes = [8, 128], strides = [1, 1]} : vector<8x384xf32> to vector<8x128xf32>
    %244 = arith.addf %242, %243 : vector<8x128xf32>
    %245 = arith.negf %244 : vector<8x128xf32>
    %246 = math.exp %245 : vector<8x128xf32>
    %cst_73 = arith.constant 1.000000e+00 : f32
    %247 = vector.broadcast %cst_73 : f32 to vector<8x128xf32>
    %248 = arith.addf %247, %246 : vector<8x128xf32>
    %249 = arith.divf %247, %248 : vector<8x128xf32>
    %250 = vector.extract_strided_slice %239 {offsets = [0, 128], sizes = [8, 128], strides = [1, 1]} : vector<8x384xf32> to vector<8x128xf32>
    %251 = vector.extract_strided_slice %241 {offsets = [0, 128], sizes = [8, 128], strides = [1, 1]} : vector<8x384xf32> to vector<8x128xf32>
    %252 = arith.addf %250, %251 : vector<8x128xf32>
    %253 = arith.negf %252 : vector<8x128xf32>
    %254 = math.exp %253 : vector<8x128xf32>
    %cst_74 = arith.constant 1.000000e+00 : f32
    %255 = vector.broadcast %cst_74 : f32 to vector<8x128xf32>
    %256 = arith.addf %255, %254 : vector<8x128xf32>
    %257 = arith.divf %255, %256 : vector<8x128xf32>
    %258 = vector.extract_strided_slice %239 {offsets = [0, 256], sizes = [8, 128], strides = [1, 1]} : vector<8x384xf32> to vector<8x128xf32>
    %259 = vector.extract_strided_slice %241 {offsets = [0, 256], sizes = [8, 128], strides = [1, 1]} : vector<8x384xf32> to vector<8x128xf32>
    %260 = arith.addf %259, %11 : vector<8x128xf32>
    %261 = arith.mulf %249, %260 : vector<8x128xf32>
    %262 = arith.addf %258, %261 : vector<8x128xf32>
    %263 = math.tanh %262 : vector<8x128xf32>
    %cst_75 = arith.constant 1.000000e+00 : f32
    %264 = vector.broadcast %cst_75 : f32 to vector<8x128xf32>
    %265 = arith.subf %264, %257 : vector<8x128xf32>
    %266 = arith.mulf %265, %263 : vector<8x128xf32>
    %267 = arith.mulf %257, %236 : vector<8x128xf32>
    %268 = arith.addf %266, %267 : vector<8x128xf32>
    %c8_i32 = arith.constant 8 : i32
    %c0_76 = arith.constant 0 : index
    %c0_77 = arith.constant 0 : index
    %269 = vector.load %arg6[%c0_76, %c0_77] : memref<128x128xf32, #tpu.memory_space<vmem>>, vector<128x128xf32>
    %cst_78 = arith.constant dense<0.000000e+00> : vector<8x128xf32>
    %270 = tpu.matmul %268, %269, %cst_78 {dimension_numbers = #tpu.dot_dimension_numbers<[1], [0], [0], [1], [0, 0, 1, 1], [], []>} : vector<8x128xf32>, vector<128x128xf32>, vector<8x128xf32> -> vector<8x128xf32>
    %c0_79 = arith.constant 0 : index
    %c0_80 = arith.constant 0 : index
    %271 = vector.load %arg7[%c0_79, %c0_80] : memref<1x128xf32, #tpu.memory_space<vmem>>, vector<1x128xf32>
    %272 = vector.broadcast %271 : vector<1x128xf32> to vector<8x128xf32>
    %273 = arith.addf %270, %272 : vector<8x128xf32>
    %c0_81 = arith.constant 0 : index
    %c0_82 = arith.constant 0 : index
    %274 = vector.load %arg8[%c0_81, %c0_82] : memref<8x128xf32, #tpu.memory_space<vmem>>, vector<8x128xf32>
    tpu.vector_store %arg8[%c0_81, %c0_82], %273 {strides = array<i32>} : memref<8x128xf32, #tpu.memory_space<vmem>>, vector<8x128xf32>,
    return
  }
  func.func @transform_0(%arg0: i32) -> (i32, i32, i32) {
    %c0_i32 = arith.constant 0 : i32
    %c0_i32_0 = arith.constant 0 : i32
    %c0_i32_1 = arith.constant 0 : i32
    %c0_i32_2 = arith.constant 0 : i32
    return %c0_i32, %c0_i32_0, %c0_i32_1 : i32, i32, i32
  }
  func.func @transform_1(%arg0: i32) -> (i32, i32) {
    %c0_i32 = arith.constant 0 : i32
    %c0_i32_0 = arith.constant 0 : i32
    %c0_i32_1 = arith.constant 0 : i32
    return %c0_i32, %c0_i32_0 : i32, i32
  }
  func.func @transform_2(%arg0: i32) -> (i32, i32) {
    %c0_i32 = arith.constant 0 : i32
    %c0_i32_0 = arith.constant 0 : i32
    %c0_i32_1 = arith.constant 0 : i32
    return %c0_i32, %c0_i32_0 : i32, i32
  }
  func.func @transform_3(%arg0: i32) -> (i32, i32) {
    %c0_i32 = arith.constant 0 : i32
    %c0_i32_0 = arith.constant 0 : i32
    %c0_i32_1 = arith.constant 0 : i32
    return %c0_i32, %c0_i32_0 : i32, i32
  }
  func.func @transform_4(%arg0: i32) -> (i32, i32) {
    %c0_i32 = arith.constant 0 : i32
    %c0_i32_0 = arith.constant 0 : i32
    %c0_i32_1 = arith.constant 0 : i32
    return %c0_i32, %c0_i32_0 : i32, i32
  }
  func.func @transform_5(%arg0: i32) -> (i32, i32) {
    %c0_i32 = arith.constant 0 : i32
    %c0_i32_0 = arith.constant 0 : i32
    %c0_i32_1 = arith.constant 0 : i32
    return %c0_i32, %c0_i32_0 : i32, i32
  }
  func.func @transform_6(%arg0: i32) -> (i32, i32) {
    %c0_i32 = arith.constant 0 : i32
    %c0_i32_0 = arith.constant 0 : i32
    %c0_i32_1 = arith.constant 0 : i32
    return %c0_i32, %c0_i32_0 : i32, i32
  }
  func.func @transform_7(%arg0: i32) -> (i32, i32) {
    %c0_i32 = arith.constant 0 : i32
    %c0_i32_0 = arith.constant 0 : i32
    %c0_i32_1 = arith.constant 0 : i32
    return %c0_i32, %c0_i32_0 : i32, i32
  }
}

</mosaic_0001>

<llo_original>
// kernel: tpu_custom_call.1
$region0: #{tpu_custom_call.1}
  #allocation0 [shape = 'u32[]', space=smem, size = 0x4, offset = 0x4, fixed_abs, tag = 'smem constant byte address 0x4 - core index']
  #allocation1 [shape = 'u32[144,128]{1,0:T(1,128)}', space=vmem, size = 0x12000, scoped, tag = 'internal scratch']
  #allocation2 [shape = 'f32[8,8,384]{2,1,0:T(8,128)}', space=vmem, size = 0x18000, scoped, tag = 'scratch operand']
  %s0 = inlined_call_operand.hbm [shape: f32[8,8,16], index: 0, kind: input, shape index: {}]
  %s1 = inlined_call_operand.hbm [shape: f32[16,384], index: 1, kind: input, shape index: {}]
  %s2 = inlined_call_operand.hbm [shape: f32[128,384], index: 2, kind: input, shape index: {}]
  %s3 = inlined_call_operand.vmem [shape: f32[1,384], index: 3, kind: input, shape index: {}]
  %s4 = inlined_call_operand.vmem [shape: f32[1,128], index: 4, kind: input, shape index: {}]
  %s5 = inlined_call_operand.hbm [shape: f32[128,128], index: 5, kind: input, shape index: {}]
  %s6 = inlined_call_operand.vmem [shape: f32[1,128], index: 6, kind: input, shape index: {}]
  %s7 = inlined_call_operand.hbm [shape: f32[8,128], index: 7, kind: output, shape index: {}]
  %s8 = sld [smem:[#allocation0]]
  $region54: #{tpu_custom_call.1} parent=0
    _
  %s10 = ssub.s32 1, %s8
  %s11 = scalar_select 0, %s10, %s8
  $region1: #{tpu_custom_call.1} parent=0
    #allocation3 [shape = 'u8[32768]{0}', space=vmem, size = 0x8000, scoped, tag = 'input window, operand 0, single buffered']
    #allocation4 [shape = 's32[1]{0}', space=sflag, size = 0x4, scoped, tag = 'scoped memory for tpu_custom_call.1']
    #allocation5 [shape = 's32[1]{0}', space=sflag, size = 0x4, scoped, tag = 'scoped memory for tpu_custom_call.1']
    #allocation6 [shape = 'u8[24576]{0}', space=vmem, size = 0x6000, scoped, tag = 'input window, operand 1, single buffered']
    #allocation7 [shape = 's32[1]{0}', space=sflag, size = 0x4, scoped, tag = 'scoped memory for tpu_custom_call.1']
    #allocation8 [shape = 'u8[196608]{0}', space=vmem, size = 0x30000, scoped, tag = 'input window, operand 2, single buffered']
    #allocation9 [shape = 'u8[65536]{0}', space=vmem, size = 0x10000, scoped, tag = 'input window, operand 5, single buffered']
    #allocation10 [shape = 's32[1]{0}', space=sflag, size = 0x4, scoped, tag = 'scoped memory for tpu_custom_call.1']
    #allocation11 [shape = 'u8[4096]{0}', space=vmem, size = 0x1000, scoped, tag = 'output window, operand 0, single buffered']
    %12 = vsyncpa [#allocation4], 0
    %13 = vsyncpa [#allocation7], 0
    %14 = vsyncpa [#allocation10], 0
    %15 = vsyncpa [#allocation5], 0
    // Predicated region
    $region2: #{tpu_custom_call.1} parent=1 // pred_check
      _
    $region3: #{tpu_custom_call.1} parent=1 // pred_check_branch
      %17 = sbr.rel (0) target = $region5
    $region4: #{tpu_custom_call.1} parent=1 // pred_region
      %s19 = ssub.s32 1024, 1024
      %20 = vsyncadd [#allocation4], %s19
      %s21 = sshll.u32 [#allocation3], 4
      %s22 = int_to_ptr.vmem [resolvable:$true] %s21
      %27 = dma.hbm_to_vmem [thread:$0]  %s0, 1024, %s22, [#allocation4], 128, 128, 8
    $region5: #{tpu_custom_call.1} parent=1 // pred_fallthru
      _
    // Predicated region
    $region6: #{tpu_custom_call.1} parent=1 // pred_check
      _
    $region7: #{tpu_custom_call.1} parent=1 // pred_check_branch
      %29 = sbr.rel (0) target = $region9
    $region8: #{tpu_custom_call.1} parent=1 // pred_region
      %s31 = ssub.s32 768, 768
      %32 = vsyncadd [#allocation7], %s31
      %s33 = sshll.u32 [#allocation6], 4
      %s34 = int_to_ptr.vmem [resolvable:$true] %s33
      %39 = dma.hbm_to_vmem [thread:$0]  %s1, 768, %s34, [#allocation7], 384, 384, 24
    $region9: #{tpu_custom_call.1} parent=1 // pred_fallthru
      _
    // Predicated region
    $region10: #{tpu_custom_call.1} parent=1 // pred_check
      _
    $region11: #{tpu_custom_call.1} parent=1 // pred_check_branch
      %41 = sbr.rel (0) target = $region13
    $region12: #{tpu_custom_call.1} parent=1 // pred_region
      %s43 = ssub.s32 6144, 6144
      %44 = vsyncadd [#allocation7], %s43
      %s45 = sshll.u32 [#allocation8], 4
      %s46 = int_to_ptr.vmem [resolvable:$true] %s45
      %51 = dma.hbm_to_vmem [thread:$0]  %s2, 6144, %s46, [#allocation7], 384, 384, 24
    $region13: #{tpu_custom_call.1} parent=1 // pred_fallthru
      _
    // Predicated region
    $region14: #{tpu_custom_call.1} parent=1 // pred_check
      _
    $region15: #{tpu_custom_call.1} parent=1 // pred_check_branch
      %53 = sbr.rel (0) target = $region17
    $region16: #{tpu_custom_call.1} parent=1 // pred_region
      _
    $region17: #{tpu_custom_call.1} parent=1 // pred_fallthru
      _
    // Predicated region
    $region18: #{tpu_custom_call.1} parent=1 // pred_check
      _
    $region19: #{tpu_custom_call.1} parent=1 // pred_check_branch
      %55 = sbr.rel (0) target = $region21
    $region20: #{tpu_custom_call.1} parent=1 // pred_region
      _
    $region21: #{tpu_custom_call.1} parent=1 // pred_fallthru
      _
    // Predicated region
    $region22: #{tpu_custom_call.1} parent=1 // pred_check
      _
    $region23: #{tpu_custom_call.1} parent=1 // pred_check_branch
      %57 = sbr.rel (0) target = $region25
    $region24: #{tpu_custom_call.1} parent=1 // pred_region
      %s59 = ssub.s32 2048, 2048
      %60 = vsyncadd [#allocation10], %s59
      %s61 = sshll.u32 [#allocation9], 4
      %s62 = int_to_ptr.vmem [resolvable:$true] %s61
      %67 = dma.hbm_to_vmem [thread:$0]  %s5, 2048, %s62, [#allocation10], 128, 128, 8
    $region25: #{tpu_custom_call.1} parent=1 // pred_fallthru
      _
    // Predicated region
    $region26: #{tpu_custom_call.1} parent=1 // pred_check
      _
    $region27: #{tpu_custom_call.1} parent=1 // pred_check_branch
      %69 = sbr.rel (0) target = $region29
    $region28: #{tpu_custom_call.1} parent=1 // pred_region
      _
    $region29: #{tpu_custom_call.1} parent=1 // pred_fallthru
      _
    // Predicated region
    $region30: #{tpu_custom_call.1} parent=1 // pred_check
      _
    $region31: #{tpu_custom_call.1} parent=1 // pred_check_branch
      %71 = sbr.rel (0) target = $region33
    $region32: #{tpu_custom_call.1} parent=1 // pred_region
      %72 = dma.done [#allocation4], 1024
    $region33: #{tpu_custom_call.1} parent=1 // pred_fallthru
      _
    // Predicated region
    $region34: #{tpu_custom_call.1} parent=1 // pred_check
      _
    $region35: #{tpu_custom_call.1} parent=1 // pred_check_branch
      %74 = sbr.rel (0) target = $region37
    $region36: #{tpu_custom_call.1} parent=1 // pred_region
      %75 = dma.done [#allocation7], 768
    $region37: #{tpu_custom_call.1} parent=1 // pred_fallthru
      _
    // Predicated region
    $region38: #{tpu_custom_call.1} parent=1 // pred_check
      _
    $region39: #{tpu_custom_call.1} parent=1 // pred_check_branch
      %77 = sbr.rel (0) target = $region41
    $region40: #{tpu_custom_call.1} parent=1 // pred_region
      %78 = dma.done [#allocation7], 6144
    $region41: #{tpu_custom_call.1} parent=1 // pred_fallthru
      _
    // Predicated region
    $region42: #{tpu_custom_call.1} parent=1 // pred_check
      _
    $region43: #{tpu_custom_call.1} parent=1 // pred_check_branch
      %80 = sbr.rel (0) target = $region45
    $region44: #{tpu_custom_call.1} parent=1 // pred_region
      %81 = dma.done [#allocation10], 2048
    $region45: #{tpu_custom_call.1} parent=1 // pred_fallthru
      _
    %v82 = vld [vmem:[#allocation3] sm:$0xff]
    %v83 = vld [vmem:[#allocation3 + $0x8] sm:$0xff]
    %v84 = vld [vmem:[#allocation3 + $0x10] sm:$0xff]
    %v85 = vld [vmem:[#allocation3 + $0x18] sm:$0xff]
    %v86 = vld [vmem:[#allocation3 + $0x20] sm:$0xff]
    %v87 = vld [vmem:[#allocation3 + $0x28] sm:$0xff]
    %v88 = vld [vmem:[#allocation3 + $0x30] sm:$0xff]
    %v89 = vld [vmem:[#allocation3 + $0x38] sm:$0xff]
    %v90 = vld [vmem:[#allocation6] sm:$0xff]
    %v91 = vld [vmem:[#allocation6 + $0x8] sm:$0xff]
    %v92 = vld [vmem:[#allocation6 + $0x10] sm:$0xff]
    %v93 = vld [vmem:[#allocation6 + $0x18] sm:$0xff]
    %v94 = vld [vmem:[#allocation6 + $0x20] sm:$0xff]
    %v95 = vld [vmem:[#allocation6 + $0x28] sm:$0xff]
    %v96 = vld [vmem:[%s3] sm:$0x7]
    %v98 = vlaneseq
    %v99 = vshrl.u32 %v98, 7
    %v100 = vsub.s32 0, %v99
    %v101 = vrot.slane %v96, %v100
    %v102 = vlaneseq
    %v103 = vshrl.u32 %v102, 7
    %v104 = vsub.s32 1, %v103
    %v105 = vrot.slane %v96, %v104
    %v106 = vlaneseq
    %v107 = vshrl.u32 %v106, 7
    %v108 = vsub.s32 2, %v107
    %v109 = vrot.slane %v96, %v108
    %vm113 = vcmask 130048
    %v115 = vsel %vm113, %v82, 0
    %v118 = vsel %vm113, %v83, 0
    %v121 = vsel %vm113, %v84, 0
    %v124 = vsel %vm113, %v85, 0
    %v127 = vsel %vm113, %v86, 0
    %v130 = vsel %vm113, %v87, 0
    %v133 = vsel %vm113, %v88, 0
    %v136 = vsel %vm113, %v89, 0
    %138 = vmatprep.subr.mxu0 %v91
    %139 = vmatpush1.msra.mxu0 %v90
    %140 = vmatprep.subr.mxu0 %v94
    %141 = vmatpush1.msra.mxu0 %v93
    %142 = vmatprep.subr.mxu0 0.0
    %143 = vmatpush1.msra.mxu0 0.0
    %144 = vmatprep.subr.mxu0 0.0
    %145 = vmatpush1.msra.mxu0 0.0
    %146 = vmatprep.subr.mxu0 0.0
    %147 = vmatpush1.msra.mxu0 0.0
    %148 = vmatprep.subr.mxu0 0.0
    %149 = vmatpush1.msra.mxu0 0.0
    %150 = vmatprep.subr.mxu0 0.0
    %151 = vmatpush1.msra.mxu0 0.0
    %152 = vmatprep.subr.mxu0 0.0
    %153 = vmatpush1.msra.mxu0 0.0
    %154 = vmatprep.subr.mxu0 0.0
    %155 = vmatpush1.msra.mxu0 0.0
    %156 = vmatprep.subr.mxu0 0.0
    %157 = vmatpush1.msra.mxu0 0.0
    %158 = vmatprep.subr.mxu0 0.0
    %159 = vmatpush1.msra.mxu0 0.0
    %160 = vmatprep.subr.mxu0 0.0
    %161 = vmatpush1.msra.mxu0 0.0
    %162 = vmatprep.subr.mxu0 0.0
    %163 = vmatpush1.msra.mxu0 0.0
    %164 = vmatprep.subr.mxu0 0.0
    %165 = vmatpush1.msra.mxu0 0.0
    %166 = vmatprep.subr.mxu0 0.0
    %167 = vmatpush1.msra.mxu0 0.0
    %168 = vmatprep.subr.mxu0 0.0
    %169 = vmatpush1.msra.mxu0 0.0
    %170 = vmatprep.subr.mxu0 0.0
    %171 = vmatpush1.msra.mxu0 0.0
    %172 = vmatprep.subr.mxu0 0.0
    %173 = vmatpush1.msra.mxu0 0.0
    %174 = vmatprep.subr.mxu0 0.0
    %175 = vmatpush1.msra.mxu0 0.0
    %176 = vmatprep.subr.mxu0 0.0
    %177 = vmatpush1.msra.mxu0 0.0
    %178 = vmatprep.subr.mxu0 0.0
    %179 = vmatpush1.msra.mxu0 0.0
    %180 = vmatprep.subr.mxu0 0.0
    %181 = vmatpush1.msra.mxu0 0.0
    %182 = vmatprep.subr.mxu0 0.0
    %183 = vmatpush1.msra.mxu0 0.0
    %184 = vmatprep.subr.mxu0 0.0
    %185 = vmatpush1.msra.mxu0 0.0
    %186 = vmatprep.subr.mxu0 0.0
    %187 = vmatpush1.msra.mxu0 0.0
    %188 = vmatprep.subr.mxu0 0.0
    %189 = vmatpush1.msra.mxu0 0.0
    %190 = vmatprep.subr.mxu0 0.0
    %191 = vmatpush1.msra.mxu0 0.0
    %192 = vmatprep.subr.mxu0 0.0
    %193 = vmatpush1.msra.mxu0 0.0
    %194 = vmatprep.subr.mxu0 0.0
    %195 = vmatpush1.msra.mxu0 0.0
    %196 = vmatprep.subr.mxu0 0.0
    %197 = vmatpush1.msra.mxu0 0.0
    %198 = vmatprep.subr.mxu0 0.0
    %199 = vmatpush1.msra.mxu0 0.0
    %200 = vmatprep.subr.mxu0 0.0
    %201 = vmatpush1.msra.mxu0 0.0
    %202 = vmatprep.mubr.f32.mxu0 0.0
    %203 = vmatmul.mubr.f32.gmra.mrb[0].mxu0 %v115
    %v204 = vpop.f32.mrb[0].mxu0
    %v205 = vadd.f32 %v101, %v204
    %v206 = vpop.f32.mrb[0].mxu0
    %v207 = vadd.f32 %v105, %v206
    %208 = vmatprep.mubr.f32.mxu0 0.0
    %209 = vmatmul.mubr.f32.gmra.mrb[0].mxu0 %v118
    %v210 = vpop.f32.mrb[0].mxu0
    %v211 = vadd.f32 %v101, %v210
    %v212 = vpop.f32.mrb[0].mxu0
    %v213 = vadd.f32 %v105, %v212
    %214 = vmatprep.mubr.f32.mxu0 0.0
    %215 = vmatmul.mubr.f32.gmra.mrb[0].mxu0 %v121
    %v216 = vpop.f32.mrb[0].mxu0
    %v217 = vadd.f32 %v101, %v216
    %v218 = vpop.f32.mrb[0].mxu0
    %v219 = vadd.f32 %v105, %v218
    %220 = vmatprep.mubr.f32.mxu0 0.0
    %221 = vmatmul.mubr.f32.gmra.mrb[0].mxu0 %v124
    %v222 = vpop.f32.mrb[0].mxu0
    %v223 = vadd.f32 %v101, %v222
    %v224 = vpop.f32.mrb[0].mxu0
    %v225 = vadd.f32 %v105, %v224
    %226 = vmatprep.mubr.f32.mxu0 0.0
    %227 = vmatmul.mubr.f32.gmra.mrb[0].mxu0 %v127
    %v228 = vpop.f32.mrb[0].mxu0
    %v229 = vadd.f32 %v101, %v228
    %v230 = vpop.f32.mrb[0].mxu0
    %v231 = vadd.f32 %v105, %v230
    %232 = vmatprep.mubr.f32.mxu0 0.0
    %233 = vmatmul.mubr.f32.gmra.mrb[0].mxu0 %v130
    %v234 = vpop.f32.mrb[0].mxu0
    %v235 = vadd.f32 %v101, %v234
    %v236 = vpop.f32.mrb[0].mxu0
    %v237 = vadd.f32 %v105, %v236
    %238 = vmatprep.mubr.f32.mxu0 0.0
    %239 = vmatmul.mubr.f32.gmra.mrb[0].mxu0 %v133
    %v240 = vpop.f32.mrb[0].mxu0
    %v241 = vadd.f32 %v101, %v240
    %v242 = vpop.f32.mrb[0].mxu0
    %v243 = vadd.f32 %v105, %v242
    %244 = vmatprep.mubr.f32.mxu0 0.0
    %245 = vmatmul.mubr.f32.gmra.mrb[0].mxu0 %v136
    %v246 = vpop.f32.mrb[0].mxu0
    %v247 = vadd.f32 %v101, %v246
    %v248 = vpop.f32.mrb[0].mxu0
    %v249 = vadd.f32 %v105, %v248
    %250 = vdwg.mxu0
    %251 = vmatprep.subr.mxu0 0.0
    %252 = vmatpush1.msra.mxu0 %v92
    %253 = vmatprep.subr.mxu0 0.0
    %254 = vmatpush1.msra.mxu0 %v95
    %255 = vmatprep.subr.mxu0 0.0
    %256 = vmatpush1.msra.mxu0 0.0
    %257 = vmatprep.subr.mxu0 0.0
    %258 = vmatpush1.msra.mxu0 0.0
    %259 = vmatprep.subr.mxu0 0.0
    %260 = vmatpush1.msra.mxu0 0.0
    %261 = vmatprep.subr.mxu0 0.0
    %262 = vmatpush1.msra.mxu0 0.0
    %263 = vmatprep.subr.mxu0 0.0
    %264 = vmatpush1.msra.mxu0 0.0
    %265 = vmatprep.subr.mxu0 0.0
    %266 = vmatpush1.msra.mxu0 0.0
    %267 = vmatprep.subr.mxu0 0.0
    %268 = vmatpush1.msra.mxu0 0.0
    %269 = vmatprep.subr.mxu0 0.0
    %270 = vmatpush1.msra.mxu0 0.0
    %271 = vmatprep.subr.mxu0 0.0
    %272 = vmatpush1.msra.mxu0 0.0
    %273 = vmatprep.subr.mxu0 0.0
    %274 = vmatpush1.msra.mxu0 0.0
    %275 = vmatprep.subr.mxu0 0.0
    %276 = vmatpush1.msra.mxu0 0.0
    %277 = vmatprep.subr.mxu0 0.0
    %278 = vmatpush1.msra.mxu0 0.0
    %279 = vmatprep.subr.mxu0 0.0
    %280 = vmatpush1.msra.mxu0 0.0
    %281 = vmatprep.subr.mxu0 0.0
    %282 = vmatpush1.msra.mxu0 0.0
    %283 = vmatprep.subr.mxu0 0.0
    %284 = vmatpush1.msra.mxu0 0.0
    %285 = vmatprep.subr.mxu0 0.0
    %286 = vmatpush1.msra.mxu0 0.0
    %287 = vmatprep.subr.mxu0 0.0
    %288 = vmatpush1.msra.mxu0 0.0
    %289 = vmatprep.subr.mxu0 0.0
    %290 = vmatpush1.msra.mxu0 0.0
    %291 = vmatprep.subr.mxu0 0.0
    %292 = vmatpush1.msra.mxu0 0.0
    %293 = vmatprep.subr.mxu0 0.0
    %294 = vmatpush1.msra.mxu0 0.0
    %295 = vmatprep.subr.mxu0 0.0
    %296 = vmatpush1.msra.mxu0 0.0
    %297 = vmatprep.subr.mxu0 0.0
    %298 = vmatpush1.msra.mxu0 0.0
    %299 = vmatprep.subr.mxu0 0.0
    %300 = vmatpush1.msra.mxu0 0.0
    %301 = vmatprep.subr.mxu0 0.0
    %302 = vmatpush1.msra.mxu0 0.0
    %303 = vmatprep.subr.mxu0 0.0
    %304 = vmatpush1.msra.mxu0 0.0
    %305 = vmatprep.subr.mxu0 0.0
    %306 = vmatpush1.msra.mxu0 0.0
    %307 = vmatprep.subr.mxu0 0.0
    %308 = vmatpush1.msra.mxu0 0.0
    %309 = vmatprep.subr.mxu0 0.0
    %310 = vmatpush1.msra.mxu0 0.0
    %311 = vmatprep.subr.mxu0 0.0
    %312 = vmatpush1.msra.mxu0 0.0
    %313 = vmatprep.subr.mxu0 0.0
    %314 = vmatpush1.msra.mxu0 0.0
    %315 = vmatprep.mubr.f32.mxu0 0.0
    %316 = vmatmul.mubr.f32.gmra.mrb[0].mxu0 %v115
    %v317 = vpop.f32.mrb[0].mxu0
    %v318 = vadd.f32 %v109, %v317
    %v319 = vpop.f32.mrb[0].mxu0
    %320 = vmatprep.mubr.f32.mxu0 0.0
    %321 = vmatmul.mubr.f32.gmra.mrb[0].mxu0 %v118
    %v322 = vpop.f32.mrb[0].mxu0
    %v323 = vadd.f32 %v109, %v322
    %v324 = vpop.f32.mrb[0].mxu0
    %325 = vmatprep.mubr.f32.mxu0 0.0
    %326 = vmatmul.mubr.f32.gmra.mrb[0].mxu0 %v121
    %v327 = vpop.f32.mrb[0].mxu0
    %v328 = vadd.f32 %v109, %v327
    %v329 = vpop.f32.mrb[0].mxu0
    %330 = vmatprep.mubr.f32.mxu0 0.0
    %331 = vmatmul.mubr.f32.gmra.mrb[0].mxu0 %v124
    %v332 = vpop.f32.mrb[0].mxu0
    %v333 = vadd.f32 %v109, %v332
    %v334 = vpop.f32.mrb[0].mxu0
    %335 = vmatprep.mubr.f32.mxu0 0.0
    %336 = vmatmul.mubr.f32.gmra.mrb[0].mxu0 %v127
    %v337 = vpop.f32.mrb[0].mxu0
    %v338 = vadd.f32 %v109, %v337
    %v339 = vpop.f32.mrb[0].mxu0
    %340 = vmatprep.mubr.f32.mxu0 0.0
    %341 = vmatmul.mubr.f32.gmra.mrb[0].mxu0 %v130
    %v342 = vpop.f32.mrb[0].mxu0
    %v343 = vadd.f32 %v109, %v342
    %v344 = vpop.f32.mrb[0].mxu0
    %345 = vmatprep.mubr.f32.mxu0 0.0
    %346 = vmatmul.mubr.f32.gmra.mrb[0].mxu0 %v133
    %v347 = vpop.f32.mrb[0].mxu0
    %v348 = vadd.f32 %v109, %v347
    %v349 = vpop.f32.mrb[0].mxu0
    %350 = vmatprep.mubr.f32.mxu0 0.0
    %351 = vmatmul.mubr.f32.gmra.mrb[0].mxu0 %v136
    %v352 = vpop.f32.mrb[0].mxu0
    %v353 = vadd.f32 %v109, %v352
    %v354 = vpop.f32.mrb[0].mxu0
    %355 = vdwg.mxu0
    %356 = vst [vmem:[#allocation2] sm:$0xff] %v205
    %357 = vst [vmem:[#allocation2 + $0x8] sm:$0xff] %v207
    %358 = vst [vmem:[#allocation2 + $0x10] sm:$0xff] %v318
    %359 = vst [vmem:[#allocation2 + $0x18] sm:$0xff] %v211
    %360 = vst [vmem:[#allocation2 + $0x20] sm:$0xff] %v213
    %361 = vst [vmem:[#allocation2 + $0x28] sm:$0xff] %v323
    %362 = vst [vmem:[#allocation2 + $0x30] sm:$0xff] %v217
    %363 = vst [vmem:[#allocation2 + $0x38] sm:$0xff] %v219
    %364 = vst [vmem:[#allocation2 + $0x40] sm:$0xff] %v328
    %365 = vst [vmem:[#allocation2 + $0x48] sm:$0xff] %v223
    %366 = vst [vmem:[#allocation2 + $0x50] sm:$0xff] %v225
    %367 = vst [vmem:[#allocation2 + $0x58] sm:$0xff] %v333
    %368 = vst [vmem:[#allocation2 + $0x60] sm:$0xff] %v229
    %369 = vst [vmem:[#allocation2 + $0x68] sm:$0xff] %v231
    %370 = vst [vmem:[#allocation2 + $0x70] sm:$0xff] %v338
    %371 = vst [vmem:[#allocation2 + $0x78] sm:$0xff] %v235
    %372 = vst [vmem:[#allocation2 + $0x80] sm:$0xff] %v237
    %373 = vst [vmem:[#allocation2 + $0x88] sm:$0xff] %v343
    %374 = vst [vmem:[#allocation2 + $0x90] sm:$0xff] %v241
    %375 = vst [vmem:[#allocation2 + $0x98] sm:$0xff] %v243
    %376 = vst [vmem:[#allocation2 + $0xa0] sm:$0xff] %v348
    %377 = vst [vmem:[#allocation2 + $0xa8] sm:$0xff] %v247
    %378 = vst [vmem:[#allocation2 + $0xb0] sm:$0xff] %v249
    %379 = vst [vmem:[#allocation2 + $0xb8] sm:$0xff] %v353
    %v380 = vld [vmem:[%s4] sm:$0x1]
    %v382 = vlaneseq
    %v383 = vshrl.u32 %v382, 7
    %v384 = vsub.s32 0, %v383
    %v385 = vrot.slane %v380, %v384
    %v387 = vld [vmem:[#allocation2] sm:$0xff]
    %v388 = vld [vmem:[#allocation2 + $0x8] sm:$0xff]
    %v389 = vld [vmem:[#allocation2 + $0x10] sm:$0xff]
    %v390 = vld [vmem:[#allocation8] sm:$0xff]
    %v391 = vld [vmem:[#allocation8 + $0x8] sm:$0xff]
    %v392 = vld [vmem:[#allocation8 + $0x10] sm:$0xff]
    %v393 = vld [vmem:[#allocation8 + $0x18] sm:$0xff]
    %v394 = vld [vmem:[#allocation8 + $0x20] sm:$0xff]
    %v395 = vld [vmem:[#allocation8 + $0x28] sm:$0xff]
    %v396 = vld [vmem:[#allocation8 + $0x30] sm:$0xff]
    %v397 = vld [vmem:[#allocation8 + $0x38] sm:$0xff]
    %v398 = vld [vmem:[#allocation8 + $0x40] sm:$0xff]
    %v399 = vld [vmem:[#allocation8 + $0x48] sm:$0xff]
    %v400 = vld [vmem:[#allocation8 + $0x50] sm:$0xff]
    %v401 = vld [vmem:[#allocation8 + $0x58] sm:$0xff]
    %v402 = vld [vmem:[#allocation8 + $0x60] sm:$0xff]
    %v403 = vld [vmem:[#allocation8 + $0x68] sm:$0xff]
    %v404 = vld [vmem:[#allocation8 + $0x70] sm:$0xff]
    %v405 = vld [vmem:[#allocation8 + $0x78] sm:$0xff]
    %v406 = vld [vmem:[#allocation8 + $0x80] sm:$0xff]
    %v407 = vld [vmem:[#allocation8 + $0x88] sm:$0xff]
    %v408 = vld [vmem:[#allocation8 + $0x90] sm:$0xff]
    %v409 = vld [vmem:[#allocation8 + $0x98] sm:$0xff]
    %v410 = vld [vmem:[#allocation8 + $0xa0] sm:$0xff]
    %v411 = vld [vmem:[#allocation8 + $0xa8] sm:$0xff]
    %v412 = vld [vmem:[#allocation8 + $0xb0] sm:$0xff]
    %v413 = vld [vmem:[#allocation8 + $0xb8] sm:$0xff]
    %v414 = vld [vmem:[#allocation8 + $0xc0] sm:$0xff]
    %v415 = vld [vmem:[#allocation8 + $0xc8] sm:$0xff]
    %v416 = vld [vmem:[#allocation8 + $0xd0] sm:$0xff]
    %v417 = vld [vmem:[#allocation8 + $0xd8] sm:$0xff]
    %v418 = vld [vmem:[#allocation8 + $0xe0] sm:$0xff]
    %v419 = vld [vmem:[#allocation8 + $0xe8] sm:$0xff]
    %v420 = vld [vmem:[#allocation8 + $0xf0] sm:$0xff]
    %v421 = vld [vmem:[#allocation8 + $0xf8] sm:$0xff]
    %v422 = vld [vmem:[#allocation8 + $0x100] sm:$0xff]
    %v423 = vld [vmem:[#allocation8 + $0x108] sm:$0xff]
    %v424 = vld [vmem:[#allocation8 + $0x110] sm:$0xff]
    %v425 = vld [vmem:[#allocation8 + $0x118] sm:$0xff]
    %v426 = vld [vmem:[#allocation8 + $0x120] sm:$0xff]
    %v427 = vld [vmem:[#allocation8 + $0x128] sm:$0xff]
    %v428 = vld [vmem:[#allocation8 + $0x130] sm:$0xff]
    %v429 = vld [vmem:[#allocation8 + $0x138] sm:$0xff]
    %v430 = vld [vmem:[#allocation8 + $0x140] sm:$0xff]
    %v431 = vld [vmem:[#allocation8 + $0x148] sm:$0xff]
    %v432 = vld [vmem:[#allocation8 + $0x150] sm:$0xff]
    %v433 = vld [vmem:[#allocation8 + $0x158] sm:$0xff]
    %v434 = vld [vmem:[#allocation8 + $0x160] sm:$0xff]
    %v435 = vld [vmem:[#allocation8 + $0x168] sm:$0xff]
    %v436 = vld [vmem:[#allocation8 + $0x170] sm:$0xff]
    %v437 = vld [vmem:[#allocation8 + $0x178] sm:$0xff]
    %438 = vmatprep.subr.mxu0 %v391
    %439 = vmatpush1.msra.mxu0 %v390
    %440 = vmatprep.subr.mxu0 %v394
    %441 = vmatpush1.msra.mxu0 %v393
    %442 = vmatprep.subr.mxu0 %v397
    %443 = vmatpush1.msra.mxu0 %v396
    %444 = vmatprep.subr.mxu0 %v400
    %445 = vmatpush1.msra.mxu0 %v399
    %446 = vmatprep.subr.mxu0 %v403
    %447 = vmatpush1.msra.mxu0 %v402
    %448 = vmatprep.subr.mxu0 %v406
    %449 = vmatpush1.msra.mxu0 %v405
    %450 = vmatprep.subr.mxu0 %v409
    %451 = vmatpush1.msra.mxu0 %v408
    %452 = vmatprep.subr.mxu0 %v412
    %453 = vmatpush1.msra.mxu0 %v411
    %454 = vmatprep.subr.mxu0 %v415
    %455 = vmatpush1.msra.mxu0 %v414
    %456 = vmatprep.subr.mxu0 %v418
    %457 = vmatpush1.msra.mxu0 %v417
    %458 = vmatprep.subr.mxu0 %v421
    %459 = vmatpush1.msra.mxu0 %v420
    %460 = vmatprep.subr.mxu0 %v424
    %461 = vmatpush1.msra.mxu0 %v423
    %462 = vmatprep.subr.mxu0 %v427
    %463 = vmatpush1.msra.mxu0 %v426
    %464 = vmatprep.subr.mxu0 %v430
    %465 = vmatpush1.msra.mxu0 %v429
    %466 = vmatprep.subr.mxu0 %v433
    %467 = vmatpush1.msra.mxu0 %v432
    %468 = vmatprep.subr.mxu0 %v436
    %469 = vmatpush1.msra.mxu0 %v435
    %470 = vmatprep.subr.mxu0 0.0
    %471 = vmatpush1.msra.mxu0 0.0
    %472 = vmatprep.subr.mxu0 0.0
    %473 = vmatpush1.msra.mxu0 0.0
    %474 = vmatprep.subr.mxu0 0.0
    %475 = vmatpush1.msra.mxu0 0.0
    %476 = vmatprep.subr.mxu0 0.0
    %477 = vmatpush1.msra.mxu0 0.0
    %478 = vmatprep.subr.mxu0 0.0
    %479 = vmatpush1.msra.mxu0 0.0
    %480 = vmatprep.subr.mxu0 0.0
    %481 = vmatpush1.msra.mxu0 0.0
    %482 = vmatprep.subr.mxu0 0.0
    %483 = vmatpush1.msra.mxu0 0.0
    %484 = vmatprep.subr.mxu0 0.0
    %485 = vmatpush1.msra.mxu0 0.0
    %486 = vmatprep.subr.mxu0 0.0
    %487 = vmatpush1.msra.mxu0 0.0
    %488 = vmatprep.subr.mxu0 0.0
    %489 = vmatpush1.msra.mxu0 0.0
    %490 = vmatprep.subr.mxu0 0.0
    %491 = vmatpush1.msra.mxu0 0.0
    %492 = vmatprep.subr.mxu0 0.0
    %493 = vmatpush1.msra.mxu0 0.0
    %494 = vmatprep.subr.mxu0 0.0
    %495 = vmatpush1.msra.mxu0 0.0
    %496 = vmatprep.subr.mxu0 0.0
    %497 = vmatpush1.msra.mxu0 0.0
    %498 = vmatprep.subr.mxu0 0.0
    %499 = vmatpush1.msra.mxu0 0.0
    %500 = vmatprep.subr.mxu0 0.0
    %501 = vmatpush1.msra.mxu0 0.0
    %502 = vmatprep.mubr.f32.mxu0 0.0
    %503 = vmatmul.mubr.f32.gmra.mrb[0].mxu0 0.0
    %v504 = vpop.f32.mrb[0].mxu0
    %v505 = vadd.f32 0.0, %v504
    %v506 = vpop.f32.mrb[0].mxu0
    %v507 = vadd.f32 0.0, %v506
    %508 = vdwg.mxu0
    %509 = vmatprep.subr.mxu0 0.0
    %510 = vmatpush1.msra.mxu0 %v392
    %511 = vmatprep.subr.mxu0 0.0
    %512 = vmatpush1.msra.mxu0 %v395
    %513 = vmatprep.subr.mxu0 0.0
    %514 = vmatpush1.msra.mxu0 %v398
    %515 = vmatprep.subr.mxu0 0.0
    %516 = vmatpush1.msra.mxu0 %v401
    %517 = vmatprep.subr.mxu0 0.0
    %518 = vmatpush1.msra.mxu0 %v404
    %519 = vmatprep.subr.mxu0 0.0
    %520 = vmatpush1.msra.mxu0 %v407
    %521 = vmatprep.subr.mxu0 0.0
    %522 = vmatpush1.msra.mxu0 %v410
    %523 = vmatprep.subr.mxu0 0.0
    %524 = vmatpush1.msra.mxu0 %v413
    %525 = vmatprep.subr.mxu0 0.0
    %526 = vmatpush1.msra.mxu0 %v416
    %527 = vmatprep.subr.mxu0 0.0
    %528 = vmatpush1.msra.mxu0 %v419
    %529 = vmatprep.subr.mxu0 0.0
    %530 = vmatpush1.msra.mxu0 %v422
    %531 = vmatprep.subr.mxu0 0.0
    %532 = vmatpush1.msra.mxu0 %v425
    %533 = vmatprep.subr.mxu0 0.0
    %534 = vmatpush1.msra.mxu0 %v428
    %535 = vmatprep.subr.mxu0 0.0
    %536 = vmatpush1.msra.mxu0 %v431
    %537 = vmatprep.subr.mxu0 0.0
    %538 = vmatpush1.msra.mxu0 %v434
    %539 = vmatprep.subr.mxu0 0.0
    %540 = vmatpush1.msra.mxu0 %v437
    %541 = vmatprep.subr.mxu0 0.0
    %542 = vmatpush1.msra.mxu0 0.0
    %543 = vmatprep.subr.mxu0 0.0
    %544 = vmatpush1.msra.mxu0 0.0
    %545 = vmatprep.subr.mxu0 0.0
    %546 = vmatpush1.msra.mxu0 0.0
    %547 = vmatprep.subr.mxu0 0.0
    %548 = vmatpush1.msra.mxu0 0.0
    %549 = vmatprep.subr.mxu0 0.0
    %550 = vmatpush1.msra.mxu0 0.0
    %551 = vmatprep.subr.mxu0 0.0
    %552 = vmatpush1.msra.mxu0 0.0
    %553 = vmatprep.subr.mxu0 0.0
    %554 = vmatpush1.msra.mxu0 0.0
    %555 = vmatprep.subr.mxu0 0.0
    %556 = vmatpush1.msra.mxu0 0.0
    %557 = vmatprep.subr.mxu0 0.0
    %558 = vmatpush1.msra.mxu0 0.0
    %559 = vmatprep.subr.mxu0 0.0
    %560 = vmatpush1.msra.mxu0 0.0
    %561 = vmatprep.subr.mxu0 0.0
    %562 = vmatpush1.msra.mxu0 0.0
    %563 = vmatprep.subr.mxu0 0.0
    %564 = vmatpush1.msra.mxu0 0.0
    %565 = vmatprep.subr.mxu0 0.0
    %566 = vmatpush1.msra.mxu0 0.0
    %567 = vmatprep.subr.mxu0 0.0
    %568 = vmatpush1.msra.mxu0 0.0
    %569 = vmatprep.subr.mxu0 0.0
    %570 = vmatpush1.msra.mxu0 0.0
    %571 = vmatprep.subr.mxu0 0.0
    %572 = vmatpush1.msra.mxu0 0.0
    %573 = vmatprep.mubr.f32.mxu0 0.0
    %574 = vmatmul.mubr.f32.gmra.mrb[0].mxu0 0.0
    %v575 = vpop.f32.mrb[0].mxu0
    %v576 = vadd.f32 0.0, %v575
    %v577 = vpop.f32.mrb[0].mxu0
    %578 = vdwg.mxu0
    %v579 = vadd.f32 %v387, %v505
    %v580 = vxor.u32 %v579, 2147483648
    %v581 = vmul.f32 %v580, 1.442695
    %v582 = vpow.pop %v581
    %v583 = vadd.f32 %v582, 1.0
    %v584 = vrcp.pop %v583
    %v585 = vmul.f32 1.0, %v584
    %v586 = vadd.f32 %v388, %v507
    %v587 = vxor.u32 %v586, 2147483648
    %v588 = vmul.f32 %v587, 1.442695
    %v589 = vpow.pop %v588
    %v590 = vadd.f32 %v589, 1.0
    %v591 = vrcp.pop %v590
    %v592 = vmul.f32 1.0, %v591
    %v593 = vadd.f32 %v576, %v385
    %v594 = vmul.f32 %v585, %v593
    %v595 = vadd.f32 %v389, %v594
    %v596 = vtanh.pop %v595
    %v597 = vsub.f32 1.0, %v592
    %v598 = vmul.f32 %v597, %v596
    %v599 = vmul.f32 %v592, 0.0
    %v600 = vadd.f32 %v598, %v599
    %s601 = scalar_lea.vmem [#allocation2], 24
    %v602 = vld [vmem:[%s601] sm:$0xff]
    %v603 = vld [vmem:[%s601 + $0x8] sm:$0xff]
    %v604 = vld [vmem:[%s601 + $0x10] sm:$0xff]
    %605 = vmatprep.subr.mxu0 %v391
    %606 = vmatpush1.msra.mxu0 %v390
    %607 = vmatprep.subr.mxu0 %v394
    %608 = vmatpush1.msra.mxu0 %v393
    %609 = vmatprep.subr.mxu0 %v397
    %610 = vmatpush1.msra.mxu0 %v396
    %611 = vmatprep.subr.mxu0 %v400
    %612 = vmatpush1.msra.mxu0 %v399
    %613 = vmatprep.subr.mxu0 %v403
    %614 = vmatpush1.msra.mxu0 %v402
    %615 = vmatprep.subr.mxu0 %v406
    %616 = vmatpush1.msra.mxu0 %v405
    %617 = vmatprep.subr.mxu0 %v409
    %618 = vmatpush1.msra.mxu0 %v408
    %619 = vmatprep.subr.mxu0 %v412
    %620 = vmatpush1.msra.mxu0 %v411
    %621 = vmatprep.subr.mxu0 %v415
    %622 = vmatpush1.msra.mxu0 %v414
    %623 = vmatprep.subr.mxu0 %v418
    %624 = vmatpush1.msra.mxu0 %v417
    %625 = vmatprep.subr.mxu0 %v421
    %626 = vmatpush1.msra.mxu0 %v420
    %627 = vmatprep.subr.mxu0 %v424
    %628 = vmatpush1.msra.mxu0 %v423
    %629 = vmatprep.subr.mxu0 %v427
    %630 = vmatpush1.msra.mxu0 %v426
    %631 = vmatprep.subr.mxu0 %v430
    %632 = vmatpush1.msra.mxu0 %v429
    %633 = vmatprep.subr.mxu0 %v433
    %634 = vmatpush1.msra.mxu0 %v432
    %635 = vmatprep.subr.mxu0 %v436
    %636 = vmatpush1.msra.mxu0 %v435
    %637 = vmatprep.subr.mxu0 0.0
    %638 = vmatpush1.msra.mxu0 0.0
    %639 = vmatprep.subr.mxu0 0.0
    %640 = vmatpush1.msra.mxu0 0.0
    %641 = vmatprep.subr.mxu0 0.0
    %642 = vmatpush1.msra.mxu0 0.0
    %643 = vmatprep.subr.mxu0 0.0
    %644 = vmatpush1.msra.mxu0 0.0
    %645 = vmatprep.subr.mxu0 0.0
    %646 = vmatpush1.msra.mxu0 0.0
    %647 = vmatprep.subr.mxu0 0.0
    %648 = vmatpush1.msra.mxu0 0.0
    %649 = vmatprep.subr.mxu0 0.0
    %650 = vmatpush1.msra.mxu0 0.0
    %651 = vmatprep.subr.mxu0 0.0
    %652 = vmatpush1.msra.mxu0 0.0
    %653 = vmatprep.subr.mxu0 0.0
    %654 = vmatpush1.msra.mxu0 0.0
    %655 = vmatprep.subr.mxu0 0.0
    %656 = vmatpush1.msra.mxu0 0.0
    %657 = vmatprep.subr.mxu0 0.0
    %658 = vmatpush1.msra.mxu0 0.0
    %659 = vmatprep.subr.mxu0 0.0
    %660 = vmatpush1.msra.mxu0 0.0
    %661 = vmatprep.subr.mxu0 0.0
    %662 = vmatpush1.msra.mxu0 0.0
    %663 = vmatprep.subr.mxu0 0.0
    %664 = vmatpush1.msra.mxu0 0.0
    %665 = vmatprep.subr.mxu0 0.0
    %666 = vmatpush1.msra.mxu0 0.0
    %667 = vmatprep.subr.mxu0 0.0
    %668 = vmatpush1.msra.mxu0 0.0
    %669 = vmatprep.mubr.f32.mxu0 0.0
    %670 = vmatmul.mubr.f32.gmra.mrb[0].mxu0 %v600
    %v671 = vpop.f32.mrb[0].mxu0
    %v672 = vadd.f32 0.0, %v671
    %v673 = vpop.f32.mrb[0].mxu0
    %v674 = vadd.f32 0.0, %v673
    %675 = vdwg.mxu0
    %676 = vmatprep.subr.mxu0 0.0
    %677 = vmatpush1.msra.mxu0 %v392
    %678 = vmatprep.subr.mxu0 0.0
    %679 = vmatpush1.msra.mxu0 %v395
    %680 = vmatprep.subr.mxu0 0.0
    %681 = vmatpush1.msra.mxu0 %v398
    %682 = vmatprep.subr.mxu0 0.0
    %683 = vmatpush1.msra.mxu0 %v401
    %684 = vmatprep.subr.mxu0 0.0
    %685 = vmatpush1.msra.mxu0 %v404
    %686 = vmatprep.subr.mxu0 0.0
    %687 = vmatpush1.msra.mxu0 %v407
    %688 = vmatprep.subr.mxu0 0.0
    %689 = vmatpush1.msra.mxu0 %v410
    %690 = vmatprep.subr.mxu0 0.0
    %691 = vmatpush1.msra.mxu0 %v413
    %692 = vmatprep.subr.mxu0 0.0
    %693 = vmatpush1.msra.mxu0 %v416
    %694 = vmatprep.subr.mxu0 0.0
    %695 = vmatpush1.msra.mxu0 %v419
    %696 = vmatprep.subr.mxu0 0.0
    %697 = vmatpush1.msra.mxu0 %v422
    %698 = vmatprep.subr.mxu0 0.0
    %699 = vmatpush1.msra.mxu0 %v425
    %700 = vmatprep.subr.mxu0 0.0
    %701 = vmatpush1.msra.mxu0 %v428
    %702 = vmatprep.subr.mxu0 0.0
    %703 = vmatpush1.msra.mxu0 %v431
    %704 = vmatprep.subr.mxu0 0.0
    %705 = vmatpush1.msra.mxu0 %v434
    %706 = vmatprep.subr.mxu0 0.0
    %707 = vmatpush1.msra.mxu0 %v437
    %708 = vmatprep.subr.mxu0 0.0
    %709 = vmatpush1.msra.mxu0 0.0
    %710 = vmatprep.subr.mxu0 0.0
    %711 = vmatpush1.msra.mxu0 0.0
    %712 = vmatprep.subr.mxu0 0.0
    %713 = vmatpush1.msra.mxu0 0.0
    %714 = vmatprep.subr.mxu0 0.0
    %715 = vmatpush1.msra.mxu0 0.0
    %716 = vmatprep.subr.mxu0 0.0
    %717 = vmatpush1.msra.mxu0 0.0
    %718 = vmatprep.subr.mxu0 0.0
    %719 = vmatpush1.msra.mxu0 0.0
    %720 = vmatprep.subr.mxu0 0.0
    %721 = vmatpush1.msra.mxu0 0.0
    %722 = vmatprep.subr.mxu0 0.0
    %723 = vmatpush1.msra.mxu0 0.0
    %724 = vmatprep.subr.mxu0 0.0
    %725 = vmatpush1.msra.mxu0 0.0
    %726 = vmatprep.subr.mxu0 0.0
    %727 = vmatpush1.msra.mxu0 0.0
    %728 = vmatprep.subr.mxu0 0.0
    %729 = vmatpush1.msra.mxu0 0.0
    %730 = vmatprep.subr.mxu0 0.0
    %731 = vmatpush1.msra.mxu0 0.0
    %732 = vmatprep.subr.mxu0 0.0
    %733 = vmatpush1.msra.mxu0 0.0
    %734 = vmatprep.subr.mxu0 0.0
    %735 = vmatpush1.msra.mxu0 0.0
    %736 = vmatprep.subr.mxu0 0.0
    %737 = vmatpush1.msra.mxu0 0.0
    %738 = vmatprep.subr.mxu0 0.0
    %739 = vmatpush1.msra.mxu0 0.0
    %740 = vmatprep.mubr.f32.mxu0 0.0
    %741 = vmatmul.mubr.f32.gmra.mrb[0].mxu0 %v600
    %v742 = vpop.f32.mrb[0].mxu0
    %v743 = vadd.f32 0.0, %v742
    %v744 = vpop.f32.mrb[0].mxu0
    %745 = vdwg.mxu0
    %v746 = vadd.f32 %v602, %v672
    %v747 = vxor.u32 %v746, 2147483648
    %v748 = vmul.f32 %v747, 1.442695
    %v749 = vpow.pop %v748
    %v750 = vadd.f32 %v749, 1.0
    %v751 = vrcp.pop %v750
    %v752 = vmul.f32 1.0, %v751
    %v753 = vadd.f32 %v603, %v674
    %v754 = vxor.u32 %v753, 2147483648
    %v755 = vmul.f32 %v754, 1.442695
    %v756 = vpow.pop %v755
    %v757 = vadd.f32 %v756, 1.0
    %v758 = vrcp.pop %v757
    %v759 = vmul.f32 1.0, %v758
    %v760 = vadd.f32 %v743, %v385
    %v761 = vmul.f32 %v752, %v760
    %v762 = vadd.f32 %v604, %v761
    %v763 = vtanh.pop %v762
    %v764 = vsub.f32 1.0, %v759
    %v765 = vmul.f32 %v764, %v763
    %v766 = vmul.f32 %v759, %v600
    %v767 = vadd.f32 %v765, %v766
    %s768 = scalar_lea.vmem [#allocation2], 48
    %v769 = vld [vmem:[%s768] sm:$0xff]
    %v770 = vld [vmem:[%s768 + $0x8] sm:$0xff]
    %v771 = vld [vmem:[%s768 + $0x10] sm:$0xff]
    %772 = vmatprep.subr.mxu0 %v391
    %773 = vmatpush1.msra.mxu0 %v390
    %774 = vmatprep.subr.mxu0 %v394
    %775 = vmatpush1.msra.mxu0 %v393
    %776 = vmatprep.subr.mxu0 %v397
    %777 = vmatpush1.msra.mxu0 %v396
    %778 = vmatprep.subr.mxu0 %v400
    %779 = vmatpush1.msra.mxu0 %v399
    %780 = vmatprep.subr.mxu0 %v403
    %781 = vmatpush1.msra.mxu0 %v402
    %782 = vmatprep.subr.mxu0 %v406
    %783 = vmatpush1.msra.mxu0 %v405
    %784 = vmatprep.subr.mxu0 %v409
    %785 = vmatpush1.msra.mxu0 %v408
    %786 = vmatprep.subr.mxu0 %v412
    %787 = vmatpush1.msra.mxu0 %v411
    %788 = vmatprep.subr.mxu0 %v415
    %789 = vmatpush1.msra.mxu0 %v414
    %790 = vmatprep.subr.mxu0 %v418
    %791 = vmatpush1.msra.mxu0 %v417
    %792 = vmatprep.subr.mxu0 %v421
    %793 = vmatpush1.msra.mxu0 %v420
    %794 = vmatprep.subr.mxu0 %v424
    %795 = vmatpush1.msra.mxu0 %v423
    %796 = vmatprep.subr.mxu0 %v427
    %797 = vmatpush1.msra.mxu0 %v426
    %798 = vmatprep.subr.mxu0 %v430
    %799 = vmatpush1.msra.mxu0 %v429
    %800 = vmatprep.subr.mxu0 %v433
    %801 = vmatpush1.msra.mxu0 %v432
    %802 = vmatprep.subr.mxu0 %v436
    %803 = vmatpush1.msra.mxu0 %v435
    %804 = vmatprep.subr.mxu0 0.0
    %805 = vmatpush1.msra.mxu0 0.0
    %806 = vmatprep.subr.mxu0 0.0
    %807 = vmatpush1.msra.mxu0 0.0
    %808 = vmatprep.subr.mxu0 0.0
    %809 = vmatpush1.msra.mxu0 0.0
    %810 = vmatprep.subr.mxu0 0.0
    %811 = vmatpush1.msra.mxu0 0.0
    %812 = vmatprep.subr.mxu0 0.0
    %813 = vmatpush1.msra.mxu0 0.0
    %814 = vmatprep.subr.mxu0 0.0
    %815 = vmatpush1.msra.mxu0 0.0
    %816 = vmatprep.subr.mxu0 0.0
    %817 = vmatpush1.msra.mxu0 0.0
    %818 = vmatprep.subr.mxu0 0.0
    %819 = vmatpush1.msra.mxu0 0.0
    %820 = vmatprep.subr.mxu0 0.0
    %821 = vmatpush1.msra.mxu0 0.0
    %822 = vmatprep.subr.mxu0 0.0
    %823 = vmatpush1.msra.mxu0 0.0
    %824 = vmatprep.subr.mxu0 0.0
    %825 = vmatpush1.msra.mxu0 0.0
    %826 = vmatprep.subr.mxu0 0.0
    %827 = vmatpush1.msra.mxu0 0.0
    %828 = vmatprep.subr.mxu0 0.0
    %829 = vmatpush1.msra.mxu0 0.0
    %830 = vmatprep.subr.mxu0 0.0
    %831 = vmatpush1.msra.mxu0 0.0
    %832 = vmatprep.subr.mxu0 0.0
    %833 = vmatpush1.msra.mxu0 0.0
    %834 = vmatprep.subr.mxu0 0.0
    %835 = vmatpush1.msra.mxu0 0.0
    %836 = vmatprep.mubr.f32.mxu0 0.0
    %837 = vmatmul.mubr.f32.gmra.mrb[0].mxu0 %v767
    %v838 = vpop.f32.mrb[0].mxu0
    %v839 = vadd.f32 0.0, %v838
    %v840 = vpop.f32.mrb[0].mxu0
    %v841 = vadd.f32 0.0, %v840
    %842 = vdwg.mxu0
    %843 = vmatprep.subr.mxu0 0.0
    %844 = vmatpush1.msra.mxu0 %v392
    %845 = vmatprep.subr.mxu0 0.0
    %846 = vmatpush1.msra.mxu0 %v395
    %847 = vmatprep.subr.mxu0 0.0
    %848 = vmatpush1.msra.mxu0 %v398
    %849 = vmatprep.subr.mxu0 0.0
    %850 = vmatpush1.msra.mxu0 %v401
    %851 = vmatprep.subr.mxu0 0.0
    %852 = vmatpush1.msra.mxu0 %v404
    %853 = vmatprep.subr.mxu0 0.0
    %854 = vmatpush1.msra.mxu0 %v407
    %855 = vmatprep.subr.mxu0 0.0
    %856 = vmatpush1.msra.mxu0 %v410
    %857 = vmatprep.subr.mxu0 0.0
    %858 = vmatpush1.msra.mxu0 %v413
    %859 = vmatprep.subr.mxu0 0.0
    %860 = vmatpush1.msra.mxu0 %v416
    %861 = vmatprep.subr.mxu0 0.0
    %862 = vmatpush1.msra.mxu0 %v419
    %863 = vmatprep.subr.mxu0 0.0
    %864 = vmatpush1.msra.mxu0 %v422
    %865 = vmatprep.subr.mxu0 0.0
    %866 = vmatpush1.msra.mxu0 %v425
    %867 = vmatprep.subr.mxu0 0.0
    %868 = vmatpush1.msra.mxu0 %v428
    %869 = vmatprep.subr.mxu0 0.0
    %870 = vmatpush1.msra.mxu0 %v431
    %871 = vmatprep.subr.mxu0 0.0
    %872 = vmatpush1.msra.mxu0 %v434
    %873 = vmatprep.subr.mxu0 0.0
    %874 = vmatpush1.msra.mxu0 %v437
    %875 = vmatprep.subr.mxu0 0.0
    %876 = vmatpush1.msra.mxu0 0.0
    %877 = vmatprep.subr.mxu0 0.0
    %878 = vmatpush1.msra.mxu0 0.0
    %879 = vmatprep.subr.mxu0 0.0
    %880 = vmatpush1.msra.mxu0 0.0
    %881 = vmatprep.subr.mxu0 0.0
    %882 = vmatpush1.msra.mxu0 0.0
    %883 = vmatprep.subr.mxu0 0.0
    %884 = vmatpush1.msra.mxu0 0.0
    %885 = vmatprep.subr.mxu0 0.0
    %886 = vmatpush1.msra.mxu0 0.0
    %887 = vmatprep.subr.mxu0 0.0
    %888 = vmatpush1.msra.mxu0 0.0
    %889 = vmatprep.subr.mxu0 0.0
    %890 = vmatpush1.msra.mxu0 0.0
    %891 = vmatprep.subr.mxu0 0.0
    %892 = vmatpush1.msra.mxu0 0.0
    %893 = vmatprep.subr.mxu0 0.0
    %894 = vmatpush1.msra.mxu0 0.0
    %895 = vmatprep.subr.mxu0 0.0
    %896 = vmatpush1.msra.mxu0 0.0
    %897 = vmatprep.subr.mxu0 0.0
    %898 = vmatpush1.msra.mxu0 0.0
    %899 = vmatprep.subr.mxu0 0.0
    %900 = vmatpush1.msra.mxu0 0.0
    %901 = vmatprep.subr.mxu0 0.0
    %902 = vmatpush1.msra.mxu0 0.0
    %903 = vmatprep.subr.mxu0 0.0
    %904 = vmatpush1.msra.mxu0 0.0
    %905 = vmatprep.subr.mxu0 0.0
    %906 = vmatpush1.msra.mxu0 0.0
    %907 = vmatprep.mubr.f32.mxu0 0.0
    %908 = vmatmul.mubr.f32.gmra.mrb[0].mxu0 %v767
    %v909 = vpop.f32.mrb[0].mxu0
    %v910 = vadd.f32 0.0, %v909
    %v911 = vpop.f32.mrb[0].mxu0
    %912 = vdwg.mxu0
    %v913 = vadd.f32 %v769, %v839
    %v914 = vxor.u32 %v913, 2147483648
    %v915 = vmul.f32 %v914, 1.442695
    %v916 = vpow.pop %v915
    %v917 = vadd.f32 %v916, 1.0
    %v918 = vrcp.pop %v917
    %v919 = vmul.f32 1.0, %v918
    %v920 = vadd.f32 %v770, %v841
    %v921 = vxor.u32 %v920, 2147483648
    %v922 = vmul.f32 %v921, 1.442695
    %v923 = vpow.pop %v922
    %v924 = vadd.f32 %v923, 1.0
    %v925 = vrcp.pop %v924
    %v926 = vmul.f32 1.0, %v925
    %v927 = vadd.f32 %v910, %v385
    %v928 = vmul.f32 %v919, %v927
    %v929 = vadd.f32 %v771, %v928
    %v930 = vtanh.pop %v929
    %v931 = vsub.f32 1.0, %v926
    %v932 = vmul.f32 %v931, %v930
    %v933 = vmul.f32 %v926, %v767
    %v934 = vadd.f32 %v932, %v933
    %s935 = scalar_lea.vmem [#allocation2], 72
    %v936 = vld [vmem:[%s935] sm:$0xff]
    %v937 = vld [vmem:[%s935 + $0x8] sm:$0xff]
    %v938 = vld [vmem:[%s935 + $0x10] sm:$0xff]
    %939 = vmatprep.subr.mxu0 %v391
    %940 = vmatpush1.msra.mxu0 %v390
    %941 = vmatprep.subr.mxu0 %v394
    %942 = vmatpush1.msra.mxu0 %v393
    %943 = vmatprep.subr.mxu0 %v397
    %944 = vmatpush1.msra.mxu0 %v396
    %945 = vmatprep.subr.mxu0 %v400
    %946 = vmatpush1.msra.mxu0 %v399
    %947 = vmatprep.subr.mxu0 %v403
    %948 = vmatpush1.msra.mxu0 %v402
    %949 = vmatprep.subr.mxu0 %v406
    %950 = vmatpush1.msra.mxu0 %v405
    %951 = vmatprep.subr.mxu0 %v409
    %952 = vmatpush1.msra.mxu0 %v408
    %953 = vmatprep.subr.mxu0 %v412
    %954 = vmatpush1.msra.mxu0 %v411
    %955 = vmatprep.subr.mxu0 %v415
    %956 = vmatpush1.msra.mxu0 %v414
    %957 = vmatprep.subr.mxu0 %v418
    %958 = vmatpush1.msra.mxu0 %v417
    %959 = vmatprep.subr.mxu0 %v421
    %960 = vmatpush1.msra.mxu0 %v420
    %961 = vmatprep.subr.mxu0 %v424
    %962 = vmatpush1.msra.mxu0 %v423
    %963 = vmatprep.subr.mxu0 %v427
    %964 = vmatpush1.msra.mxu0 %v426
    %965 = vmatprep.subr.mxu0 %v430
    %966 = vmatpush1.msra.mxu0 %v429
    %967 = vmatprep.subr.mxu0 %v433
    %968 = vmatpush1.msra.mxu0 %v432
    %969 = vmatprep.subr.mxu0 %v436
    %970 = vmatpush1.msra.mxu0 %v435
    %971 = vmatprep.subr.mxu0 0.0
    %972 = vmatpush1.msra.mxu0 0.0
    %973 = vmatprep.subr.mxu0 0.0
    %974 = vmatpush1.msra.mxu0 0.0
    %975 = vmatprep.subr.mxu0 0.0
    %976 = vmatpush1.msra.mxu0 0.0
    %977 = vmatprep.subr.mxu0 0.0
    %978 = vmatpush1.msra.mxu0 0.0
    %979 = vmatprep.subr.mxu0 0.0
    %980 = vmatpush1.msra.mxu0 0.0
    %981 = vmatprep.subr.mxu0 0.0
    %982 = vmatpush1.msra.mxu0 0.0
    %983 = vmatprep.subr.mxu0 0.0
    %984 = vmatpush1.msra.mxu0 0.0
    %985 = vmatprep.subr.mxu0 0.0
    %986 = vmatpush1.msra.mxu0 0.0
    %987 = vmatprep.subr.mxu0 0.0
    %988 = vmatpush1.msra.mxu0 0.0
    %989 = vmatprep.subr.mxu0 0.0
    %990 = vmatpush1.msra.mxu0 0.0
    %991 = vmatprep.subr.mxu0 0.0
    %992 = vmatpush1.msra.mxu0 0.0
    %993 = vmatprep.subr.mxu0 0.0
    %994 = vmatpush1.msra.mxu0 0.0
    %995 = vmatprep.subr.mxu0 0.0
    %996 = vmatpush1.msra.mxu0 0.0
    %997 = vmatprep.subr.mxu0 0.0
    %998 = vmatpush1.msra.mxu0 0.0
    %999 = vmatprep.subr.mxu0 0.0
    %1000 = vmatpush1.msra.mxu0 0.0
    %1001 = vmatprep.subr.mxu0 0.0
    %1002 = vmatpush1.msra.mxu0 0.0
    %1003 = vmatprep.mubr.f32.mxu0 0.0
    %1004 = vmatmul.mubr.f32.gmra.mrb[0].mxu0 %v934
    %v1005 = vpop.f32.mrb[0].mxu0
    %v1006 = vadd.f32 0.0, %v1005
    %v1007 = vpop.f32.mrb[0].mxu0
    %v1008 = vadd.f32 0.0, %v1007
    %1009 = vdwg.mxu0
    %1010 = vmatprep.subr.mxu0 0.0
    %1011 = vmatpush1.msra.mxu0 %v392
    %1012 = vmatprep.subr.mxu0 0.0
    %1013 = vmatpush1.msra.mxu0 %v395
    %1014 = vmatprep.subr.mxu0 0.0
    %1015 = vmatpush1.msra.mxu0 %v398
    %1016 = vmatprep.subr.mxu0 0.0
    %1017 = vmatpush1.msra.mxu0 %v401
    %1018 = vmatprep.subr.mxu0 0.0
    %1019 = vmatpush1.msra.mxu0 %v404
    %1020 = vmatprep.subr.mxu0 0.0
    %1021 = vmatpush1.msra.mxu0 %v407
    %1022 = vmatprep.subr.mxu0 0.0
    %1023 = vmatpush1.msra.mxu0 %v410
    %1024 = vmatprep.subr.mxu0 0.0
    %1025 = vmatpush1.msra.mxu0 %v413
    %1026 = vmatprep.subr.mxu0 0.0
    %1027 = vmatpush1.msra.mxu0 %v416
    %1028 = vmatprep.subr.mxu0 0.0
    %1029 = vmatpush1.msra.mxu0 %v419
    %1030 = vmatprep.subr.mxu0 0.0
    %1031 = vmatpush1.msra.mxu0 %v422
    %1032 = vmatprep.subr.mxu0 0.0
    %1033 = vmatpush1.msra.mxu0 %v425
    %1034 = vmatprep.subr.mxu0 0.0
    %1035 = vmatpush1.msra.mxu0 %v428
    %1036 = vmatprep.subr.mxu0 0.0
    %1037 = vmatpush1.msra.mxu0 %v431
    %1038 = vmatprep.subr.mxu0 0.0
    %1039 = vmatpush1.msra.mxu0 %v434
    %1040 = vmatprep.subr.mxu0 0.0
    %1041 = vmatpush1.msra.mxu0 %v437
    %1042 = vmatprep.subr.mxu0 0.0
    %1043 = vmatpush1.msra.mxu0 0.0
    %1044 = vmatprep.subr.mxu0 0.0
    %1045 = vmatpush1.msra.mxu0 0.0
    %1046 = vmatprep.subr.mxu0 0.0
    %1047 = vmatpush1.msra.mxu0 0.0
    %1048 = vmatprep.subr.mxu0 0.0
    %1049 = vmatpush1.msra.mxu0 0.0
    %1050 = vmatprep.subr.mxu0 0.0
    %1051 = vmatpush1.msra.mxu0 0.0
    %1052 = vmatprep.subr.mxu0 0.0
    %1053 = vmatpush1.msra.mxu0 0.0
    %1054 = vmatprep.subr.mxu0 0.0
    %1055 = vmatpush1.msra.mxu0 0.0
    %1056 = vmatprep.subr.mxu0 0.0
    %1057 = vmatpush1.msra.mxu0 0.0
    %1058 = vmatprep.subr.mxu0 0.0
    %1059 = vmatpush1.msra.mxu0 0.0
    %1060 = vmatprep.subr.mxu0 0.0
    %1061 = vmatpush1.msra.mxu0 0.0
    %1062 = vmatprep.subr.mxu0 0.0
    %1063 = vmatpush1.msra.mxu0 0.0
    %1064 = vmatprep.subr.mxu0 0.0
    %1065 = vmatpush1.msra.mxu0 0.0
    %1066 = vmatprep.subr.mxu0 0.0
    %1067 = vmatpush1.msra.mxu0 0.0
    %1068 = vmatprep.subr.mxu0 0.0
    %1069 = vmatpush1.msra.mxu0 0.0
    %1070 = vmatprep.subr.mxu0 0.0
    %1071 = vmatpush1.msra.mxu0 0.0
    %1072 = vmatprep.subr.mxu0 0.0
    %1073 = vmatpush1.msra.mxu0 0.0
    %1074 = vmatprep.mubr.f32.mxu0 0.0
    %1075 = vmatmul.mubr.f32.gmra.mrb[0].mxu0 %v934
    %v1076 = vpop.f32.mrb[0].mxu0
    %v1077 = vadd.f32 0.0, %v1076
    %v1078 = vpop.f32.mrb[0].mxu0
    %1079 = vdwg.mxu0
    %v1080 = vadd.f32 %v936, %v1006
    %v1081 = vxor.u32 %v1080, 2147483648
    %v1082 = vmul.f32 %v1081, 1.442695
    %v1083 = vpow.pop %v1082
    %v1084 = vadd.f32 %v1083, 1.0
    %v1085 = vrcp.pop %v1084
    %v1086 = vmul.f32 1.0, %v1085
    %v1087 = vadd.f32 %v937, %v1008
    %v1088 = vxor.u32 %v1087, 2147483648
    %v1089 = vmul.f32 %v1088, 1.442695
    %v1090 = vpow.pop %v1089
    %v1091 = vadd.f32 %v1090, 1.0
    %v1092 = vrcp.pop %v1091
    %v1093 = vmul.f32 1.0, %v1092
    %v1094 = vadd.f32 %v1077, %v385
    %v1095 = vmul.f32 %v1086, %v1094
    %v1096 = vadd.f32 %v938, %v1095
    %v1097 = vtanh.pop %v1096
    %v1098 = vsub.f32 1.0, %v1093
    %v1099 = vmul.f32 %v1098, %v1097
    %v1100 = vmul.f32 %v1093, %v934
    %v1101 = vadd.f32 %v1099, %v1100
    %s1102 = scalar_lea.vmem [#allocation2], 96
    %v1103 = vld [vmem:[%s1102] sm:$0xff]
    %v1104 = vld [vmem:[%s1102 + $0x8] sm:$0xff]
    %v1105 = vld [vmem:[%s1102 + $0x10] sm:$0xff]
    %1106 = vmatprep.subr.mxu0 %v391
    %1107 = vmatpush1.msra.mxu0 %v390
    %1108 = vmatprep.subr.mxu0 %v394
    %1109 = vmatpush1.msra.mxu0 %v393
    %1110 = vmatprep.subr.mxu0 %v397
    %1111 = vmatpush1.msra.mxu0 %v396
    %1112 = vmatprep.subr.mxu0 %v400
    %1113 = vmatpush1.msra.mxu0 %v399
    %1114 = vmatprep.subr.mxu0 %v403
    %1115 = vmatpush1.msra.mxu0 %v402
    %1116 = vmatprep.subr.mxu0 %v406
    %1117 = vmatpush1.msra.mxu0 %v405
    %1118 = vmatprep.subr.mxu0 %v409
    %1119 = vmatpush1.msra.mxu0 %v408
    %1120 = vmatprep.subr.mxu0 %v412
    %1121 = vmatpush1.msra.mxu0 %v411
    %1122 = vmatprep.subr.mxu0 %v415
    %1123 = vmatpush1.msra.mxu0 %v414
    %1124 = vmatprep.subr.mxu0 %v418
    %1125 = vmatpush1.msra.mxu0 %v417
    %1126 = vmatprep.subr.mxu0 %v421
    %1127 = vmatpush1.msra.mxu0 %v420
    %1128 = vmatprep.subr.mxu0 %v424
    %1129 = vmatpush1.msra.mxu0 %v423
    %1130 = vmatprep.subr.mxu0 %v427
    %1131 = vmatpush1.msra.mxu0 %v426
    %1132 = vmatprep.subr.mxu0 %v430
    %1133 = vmatpush1.msra.mxu0 %v429
    %1134 = vmatprep.subr.mxu0 %v433
    %1135 = vmatpush1.msra.mxu0 %v432
    %1136 = vmatprep.subr.mxu0 %v436
    %1137 = vmatpush1.msra.mxu0 %v435
    %1138 = vmatprep.subr.mxu0 0.0
    %1139 = vmatpush1.msra.mxu0 0.0
    %1140 = vmatprep.subr.mxu0 0.0
    %1141 = vmatpush1.msra.mxu0 0.0
    %1142 = vmatprep.subr.mxu0 0.0
    %1143 = vmatpush1.msra.mxu0 0.0
    %1144 = vmatprep.subr.mxu0 0.0
    %1145 = vmatpush1.msra.mxu0 0.0
    %1146 = vmatprep.subr.mxu0 0.0
    %1147 = vmatpush1.msra.mxu0 0.0
    %1148 = vmatprep.subr.mxu0 0.0
    %1149 = vmatpush1.msra.mxu0 0.0
    %1150 = vmatprep.subr.mxu0 0.0
    %1151 = vmatpush1.msra.mxu0 0.0
    %1152 = vmatprep.subr.mxu0 0.0
    %1153 = vmatpush1.msra.mxu0 0.0
    %1154 = vmatprep.subr.mxu0 0.0
    %1155 = vmatpush1.msra.mxu0 0.0
    %1156 = vmatprep.subr.mxu0 0.0
    %1157 = vmatpush1.msra.mxu0 0.0
    %1158 = vmatprep.subr.mxu0 0.0
    %1159 = vmatpush1.msra.mxu0 0.0
    %1160 = vmatprep.subr.mxu0 0.0
    %1161 = vmatpush1.msra.mxu0 0.0
    %1162 = vmatprep.subr.mxu0 0.0
    %1163 = vmatpush1.msra.mxu0 0.0
    %1164 = vmatprep.subr.mxu0 0.0
    %1165 = vmatpush1.msra.mxu0 0.0
    %1166 = vmatprep.subr.mxu0 0.0
    %1167 = vmatpush1.msra.mxu0 0.0
    %1168 = vmatprep.subr.mxu0 0.0
    %1169 = vmatpush1.msra.mxu0 0.0
    %1170 = vmatprep.mubr.f32.mxu0 0.0
    %1171 = vmatmul.mubr.f32.gmra.mrb[0].mxu0 %v1101
    %v1172 = vpop.f32.mrb[0].mxu0
    %v1173 = vadd.f32 0.0, %v1172
    %v1174 = vpop.f32.mrb[0].mxu0
    %v1175 = vadd.f32 0.0, %v1174
    %1176 = vdwg.mxu0
    %1177 = vmatprep.subr.mxu0 0.0
    %1178 = vmatpush1.msra.mxu0 %v392
    %1179 = vmatprep.subr.mxu0 0.0
    %1180 = vmatpush1.msra.mxu0 %v395
    %1181 = vmatprep.subr.mxu0 0.0
    %1182 = vmatpush1.msra.mxu0 %v398
    %1183 = vmatprep.subr.mxu0 0.0
    %1184 = vmatpush1.msra.mxu0 %v401
    %1185 = vmatprep.subr.mxu0 0.0
    %1186 = vmatpush1.msra.mxu0 %v404
    %1187 = vmatprep.subr.mxu0 0.0
    %1188 = vmatpush1.msra.mxu0 %v407
    %1189 = vmatprep.subr.mxu0 0.0
    %1190 = vmatpush1.msra.mxu0 %v410
    %1191 = vmatprep.subr.mxu0 0.0
    %1192 = vmatpush1.msra.mxu0 %v413
    %1193 = vmatprep.subr.mxu0 0.0
    %1194 = vmatpush1.msra.mxu0 %v416
    %1195 = vmatprep.subr.mxu0 0.0
    %1196 = vmatpush1.msra.mxu0 %v419
    %1197 = vmatprep.subr.mxu0 0.0
    %1198 = vmatpush1.msra.mxu0 %v422
    %1199 = vmatprep.subr.mxu0 0.0
    %1200 = vmatpush1.msra.mxu0 %v425
    %1201 = vmatprep.subr.mxu0 0.0
    %1202 = vmatpush1.msra.mxu0 %v428
    %1203 = vmatprep.subr.mxu0 0.0
    %1204 = vmatpush1.msra.mxu0 %v431
    %1205 = vmatprep.subr.mxu0 0.0
    %1206 = vmatpush1.msra.mxu0 %v434
    %1207 = vmatprep.subr.mxu0 0.0
    %1208 = vmatpush1.msra.mxu0 %v437
    %1209 = vmatprep.subr.mxu0 0.0
    %1210 = vmatpush1.msra.mxu0 0.0
    %1211 = vmatprep.subr.mxu0 0.0
    %1212 = vmatpush1.msra.mxu0 0.0
    %1213 = vmatprep.subr.mxu0 0.0
    %1214 = vmatpush1.msra.mxu0 0.0
    %1215 = vmatprep.subr.mxu0 0.0
    %1216 = vmatpush1.msra.mxu0 0.0
    %1217 = vmatprep.subr.mxu0 0.0
    %1218 = vmatpush1.msra.mxu0 0.0
    %1219 = vmatprep.subr.mxu0 0.0
    %1220 = vmatpush1.msra.mxu0 0.0
    %1221 = vmatprep.subr.mxu0 0.0
    %1222 = vmatpush1.msra.mxu0 0.0
    %1223 = vmatprep.subr.mxu0 0.0
    %1224 = vmatpush1.msra.mxu0 0.0
    %1225 = vmatprep.subr.mxu0 0.0
    %1226 = vmatpush1.msra.mxu0 0.0
    %1227 = vmatprep.subr.mxu0 0.0
    %1228 = vmatpush1.msra.mxu0 0.0
    %1229 = vmatprep.subr.mxu0 0.0
    %1230 = vmatpush1.msra.mxu0 0.0
    %1231 = vmatprep.subr.mxu0 0.0
    %1232 = vmatpush1.msra.mxu0 0.0
    %1233 = vmatprep.subr.mxu0 0.0
    %1234 = vmatpush1.msra.mxu0 0.0
    %1235 = vmatprep.subr.mxu0 0.0
    %1236 = vmatpush1.msra.mxu0 0.0
    %1237 = vmatprep.subr.mxu0 0.0
    %1238 = vmatpush1.msra.mxu0 0.0
    %1239 = vmatprep.subr.mxu0 0.0
    %1240 = vmatpush1.msra.mxu0 0.0
    %1241 = vmatprep.mubr.f32.mxu0 0.0
    %1242 = vmatmul.mubr.f32.gmra.mrb[0].mxu0 %v1101
    %v1243 = vpop.f32.mrb[0].mxu0
    %v1244 = vadd.f32 0.0, %v1243
    %v1245 = vpop.f32.mrb[0].mxu0
    %1246 = vdwg.mxu0
    %v1247 = vadd.f32 %v1103, %v1173
    %v1248 = vxor.u32 %v1247, 2147483648
    %v1249 = vmul.f32 %v1248, 1.442695
    %v1250 = vpow.pop %v1249
    %v1251 = vadd.f32 %v1250, 1.0
    %v1252 = vrcp.pop %v1251
    %v1253 = vmul.f32 1.0, %v1252
    %v1254 = vadd.f32 %v1104, %v1175
    %v1255 = vxor.u32 %v1254, 2147483648
    %v1256 = vmul.f32 %v1255, 1.442695
    %v1257 = vpow.pop %v1256
    %v1258 = vadd.f32 %v1257, 1.0
    %v1259 = vrcp.pop %v1258
    %v1260 = vmul.f32 1.0, %v1259
    %v1261 = vadd.f32 %v1244, %v385
    %v1262 = vmul.f32 %v1253, %v1261
    %v1263 = vadd.f32 %v1105, %v1262
    %v1264 = vtanh.pop %v1263
    %v1265 = vsub.f32 1.0, %v1260
    %v1266 = vmul.f32 %v1265, %v1264
    %v1267 = vmul.f32 %v1260, %v1101
    %v1268 = vadd.f32 %v1266, %v1267
    %s1269 = scalar_lea.vmem [#allocation2], 120
    %v1270 = vld [vmem:[%s1269] sm:$0xff]
    %v1271 = vld [vmem:[%s1269 + $0x8] sm:$0xff]
    %v1272 = vld [vmem:[%s1269 + $0x10] sm:$0xff]
    %1273 = vmatprep.subr.mxu0 %v391
    %1274 = vmatpush1.msra.mxu0 %v390
    %1275 = vmatprep.subr.mxu0 %v394
    %1276 = vmatpush1.msra.mxu0 %v393
    %1277 = vmatprep.subr.mxu0 %v397
    %1278 = vmatpush1.msra.mxu0 %v396
    %1279 = vmatprep.subr.mxu0 %v400
    %1280 = vmatpush1.msra.mxu0 %v399
    %1281 = vmatprep.subr.mxu0 %v403
    %1282 = vmatpush1.msra.mxu0 %v402
    %1283 = vmatprep.subr.mxu0 %v406
    %1284 = vmatpush1.msra.mxu0 %v405
    %1285 = vmatprep.subr.mxu0 %v409
    %1286 = vmatpush1.msra.mxu0 %v408
    %1287 = vmatprep.subr.mxu0 %v412
    %1288 = vmatpush1.msra.mxu0 %v411
    %1289 = vmatprep.subr.mxu0 %v415
    %1290 = vmatpush1.msra.mxu0 %v414
    %1291 = vmatprep.subr.mxu0 %v418
    %1292 = vmatpush1.msra.mxu0 %v417
    %1293 = vmatprep.subr.mxu0 %v421
    %1294 = vmatpush1.msra.mxu0 %v420
    %1295 = vmatprep.subr.mxu0 %v424
    %1296 = vmatpush1.msra.mxu0 %v423
    %1297 = vmatprep.subr.mxu0 %v427
    %1298 = vmatpush1.msra.mxu0 %v426
    %1299 = vmatprep.subr.mxu0 %v430
    %1300 = vmatpush1.msra.mxu0 %v429
    %1301 = vmatprep.subr.mxu0 %v433
    %1302 = vmatpush1.msra.mxu0 %v432
    %1303 = vmatprep.subr.mxu0 %v436
    %1304 = vmatpush1.msra.mxu0 %v435
    %1305 = vmatprep.subr.mxu0 0.0
    %1306 = vmatpush1.msra.mxu0 0.0
    %1307 = vmatprep.subr.mxu0 0.0
    %1308 = vmatpush1.msra.mxu0 0.0
    %1309 = vmatprep.subr.mxu0 0.0
    %1310 = vmatpush1.msra.mxu0 0.0
    %1311 = vmatprep.subr.mxu0 0.0
    %1312 = vmatpush1.msra.mxu0 0.0
    %1313 = vmatprep.subr.mxu0 0.0
    %1314 = vmatpush1.msra.mxu0 0.0
    %1315 = vmatprep.subr.mxu0 0.0
    %1316 = vmatpush1.msra.mxu0 0.0
    %1317 = vmatprep.subr.mxu0 0.0
    %1318 = vmatpush1.msra.mxu0 0.0
    %1319 = vmatprep.subr.mxu0 0.0
    %1320 = vmatpush1.msra.mxu0 0.0
    %1321 = vmatprep.subr.mxu0 0.0
    %1322 = vmatpush1.msra.mxu0 0.0
    %1323 = vmatprep.subr.mxu0 0.0
    %1324 = vmatpush1.msra.mxu0 0.0
    %1325 = vmatprep.subr.mxu0 0.0
    %1326 = vmatpush1.msra.mxu0 0.0
    %1327 = vmatprep.subr.mxu0 0.0
    %1328 = vmatpush1.msra.mxu0 0.0
    %1329 = vmatprep.subr.mxu0 0.0
    %1330 = vmatpush1.msra.mxu0 0.0
    %1331 = vmatprep.subr.mxu0 0.0
    %1332 = vmatpush1.msra.mxu0 0.0
    %1333 = vmatprep.subr.mxu0 0.0
    %1334 = vmatpush1.msra.mxu0 0.0
    %1335 = vmatprep.subr.mxu0 0.0
    %1336 = vmatpush1.msra.mxu0 0.0
    %1337 = vmatprep.mubr.f32.mxu0 0.0
    %1338 = vmatmul.mubr.f32.gmra.mrb[0].mxu0 %v1268
    %v1339 = vpop.f32.mrb[0].mxu0
    %v1340 = vadd.f32 0.0, %v1339
    %v1341 = vpop.f32.mrb[0].mxu0
    %v1342 = vadd.f32 0.0, %v1341
    %1343 = vdwg.mxu0
    %1344 = vmatprep.subr.mxu0 0.0
    %1345 = vmatpush1.msra.mxu0 %v392
    %1346 = vmatprep.subr.mxu0 0.0
    %1347 = vmatpush1.msra.mxu0 %v395
    %1348 = vmatprep.subr.mxu0 0.0
    %1349 = vmatpush1.msra.mxu0 %v398
    %1350 = vmatprep.subr.mxu0 0.0
    %1351 = vmatpush1.msra.mxu0 %v401
    %1352 = vmatprep.subr.mxu0 0.0
    %1353 = vmatpush1.msra.mxu0 %v404
    %1354 = vmatprep.subr.mxu0 0.0
    %1355 = vmatpush1.msra.mxu0 %v407
    %1356 = vmatprep.subr.mxu0 0.0
    %1357 = vmatpush1.msra.mxu0 %v410
    %1358 = vmatprep.subr.mxu0 0.0
    %1359 = vmatpush1.msra.mxu0 %v413
    %1360 = vmatprep.subr.mxu0 0.0
    %1361 = vmatpush1.msra.mxu0 %v416
    %1362 = vmatprep.subr.mxu0 0.0
    %1363 = vmatpush1.msra.mxu0 %v419
    %1364 = vmatprep.subr.mxu0 0.0
    %1365 = vmatpush1.msra.mxu0 %v422
    %1366 = vmatprep.subr.mxu0 0.0
    %1367 = vmatpush1.msra.mxu0 %v425
    %1368 = vmatprep.subr.mxu0 0.0
    %1369 = vmatpush1.msra.mxu0 %v428
    %1370 = vmatprep.subr.mxu0 0.0
    %1371 = vmatpush1.msra.mxu0 %v431
    %1372 = vmatprep.subr.mxu0 0.0
    %1373 = vmatpush1.msra.mxu0 %v434
    %1374 = vmatprep.subr.mxu0 0.0
    %1375 = vmatpush1.msra.mxu0 %v437
    %1376 = vmatprep.subr.mxu0 0.0
    %1377 = vmatpush1.msra.mxu0 0.0
    %1378 = vmatprep.subr.mxu0 0.0
    %1379 = vmatpush1.msra.mxu0 0.0
    %1380 = vmatprep.subr.mxu0 0.0
    %1381 = vmatpush1.msra.mxu0 0.0
    %1382 = vmatprep.subr.mxu0 0.0
    %1383 = vmatpush1.msra.mxu0 0.0
    %1384 = vmatprep.subr.mxu0 0.0
    %1385 = vmatpush1.msra.mxu0 0.0
    %1386 = vmatprep.subr.mxu0 0.0
    %1387 = vmatpush1.msra.mxu0 0.0
    %1388 = vmatprep.subr.mxu0 0.0
    %1389 = vmatpush1.msra.mxu0 0.0
    %1390 = vmatprep.subr.mxu0 0.0
    %1391 = vmatpush1.msra.mxu0 0.0
    %1392 = vmatprep.subr.mxu0 0.0
    %1393 = vmatpush1.msra.mxu0 0.0
    %1394 = vmatprep.subr.mxu0 0.0
    %1395 = vmatpush1.msra.mxu0 0.0
    %1396 = vmatprep.subr.mxu0 0.0
    %1397 = vmatpush1.msra.mxu0 0.0
    %1398 = vmatprep.subr.mxu0 0.0
    %1399 = vmatpush1.msra.mxu0 0.0
    %1400 = vmatprep.subr.mxu0 0.0
    %1401 = vmatpush1.msra.mxu0 0.0
    %1402 = vmatprep.subr.mxu0 0.0
    %1403 = vmatpush1.msra.mxu0 0.0
    %1404 = vmatprep.subr.mxu0 0.0
    %1405 = vmatpush1.msra.mxu0 0.0
    %1406 = vmatprep.subr.mxu0 0.0
    %1407 = vmatpush1.msra.mxu0 0.0
    %1408 = vmatprep.mubr.f32.mxu0 0.0
    %1409 = vmatmul.mubr.f32.gmra.mrb[0].mxu0 %v1268
    %v1410 = vpop.f32.mrb[0].mxu0
    %v1411 = vadd.f32 0.0, %v1410
    %v1412 = vpop.f32.mrb[0].mxu0
    %1413 = vdwg.mxu0
    %v1414 = vadd.f32 %v1270, %v1340
    %v1415 = vxor.u32 %v1414, 2147483648
    %v1416 = vmul.f32 %v1415, 1.442695
    %v1417 = vpow.pop %v1416
    %v1418 = vadd.f32 %v1417, 1.0
    %v1419 = vrcp.pop %v1418
    %v1420 = vmul.f32 1.0, %v1419
    %v1421 = vadd.f32 %v1271, %v1342
    %v1422 = vxor.u32 %v1421, 2147483648
    %v1423 = vmul.f32 %v1422, 1.442695
    %v1424 = vpow.pop %v1423
    %v1425 = vadd.f32 %v1424, 1.0
    %v1426 = vrcp.pop %v1425
    %v1427 = vmul.f32 1.0, %v1426
    %v1428 = vadd.f32 %v1411, %v385
    %v1429 = vmul.f32 %v1420, %v1428
    %v1430 = vadd.f32 %v1272, %v1429
    %v1431 = vtanh.pop %v1430
    %v1432 = vsub.f32 1.0, %v1427
    %v1433 = vmul.f32 %v1432, %v1431
    %v1434 = vmul.f32 %v1427, %v1268
    %v1435 = vadd.f32 %v1433, %v1434
    %s1436 = scalar_lea.vmem [#allocation2], 144
    %v1437 = vld [vmem:[%s1436] sm:$0xff]
    %v1438 = vld [vmem:[%s1436 + $0x8] sm:$0xff]
    %v1439 = vld [vmem:[%s1436 + $0x10] sm:$0xff]
    %1440 = vmatprep.subr.mxu0 %v391
    %1441 = vmatpush1.msra.mxu0 %v390
    %1442 = vmatprep.subr.mxu0 %v394
    %1443 = vmatpush1.msra.mxu0 %v393
    %1444 = vmatprep.subr.mxu0 %v397
    %1445 = vmatpush1.msra.mxu0 %v396
    %1446 = vmatprep.subr.mxu0 %v400
    %1447 = vmatpush1.msra.mxu0 %v399
    %1448 = vmatprep.subr.mxu0 %v403
    %1449 = vmatpush1.msra.mxu0 %v402
    %1450 = vmatprep.subr.mxu0 %v406
    %1451 = vmatpush1.msra.mxu0 %v405
    %1452 = vmatprep.subr.mxu0 %v409
    %1453 = vmatpush1.msra.mxu0 %v408
    %1454 = vmatprep.subr.mxu0 %v412
    %1455 = vmatpush1.msra.mxu0 %v411
    %1456 = vmatprep.subr.mxu0 %v415
    %1457 = vmatpush1.msra.mxu0 %v414
    %1458 = vmatprep.subr.mxu0 %v418
    %1459 = vmatpush1.msra.mxu0 %v417
    %1460 = vmatprep.subr.mxu0 %v421
    %1461 = vmatpush1.msra.mxu0 %v420
    %1462 = vmatprep.subr.mxu0 %v424
    %1463 = vmatpush1.msra.mxu0 %v423
    %1464 = vmatprep.subr.mxu0 %v427
    %1465 = vmatpush1.msra.mxu0 %v426
    %1466 = vmatprep.subr.mxu0 %v430
    %1467 = vmatpush1.msra.mxu0 %v429
    %1468 = vmatprep.subr.mxu0 %v433
    %1469 = vmatpush1.msra.mxu0 %v432
    %1470 = vmatprep.subr.mxu0 %v436
    %1471 = vmatpush1.msra.mxu0 %v435
    %1472 = vmatprep.subr.mxu0 0.0
    %1473 = vmatpush1.msra.mxu0 0.0
    %1474 = vmatprep.subr.mxu0 0.0
    %1475 = vmatpush1.msra.mxu0 0.0
    %1476 = vmatprep.subr.mxu0 0.0
    %1477 = vmatpush1.msra.mxu0 0.0
    %1478 = vmatprep.subr.mxu0 0.0
    %1479 = vmatpush1.msra.mxu0 0.0
    %1480 = vmatprep.subr.mxu0 0.0
    %1481 = vmatpush1.msra.mxu0 0.0
    %1482 = vmatprep.subr.mxu0 0.0
    %1483 = vmatpush1.msra.mxu0 0.0
    %1484 = vmatprep.subr.mxu0 0.0
    %1485 = vmatpush1.msra.mxu0 0.0
    %1486 = vmatprep.subr.mxu0 0.0
    %1487 = vmatpush1.msra.mxu0 0.0
    %1488 = vmatprep.subr.mxu0 0.0
    %1489 = vmatpush1.msra.mxu0 0.0
    %1490 = vmatprep.subr.mxu0 0.0
    %1491 = vmatpush1.msra.mxu0 0.0
    %1492 = vmatprep.subr.mxu0 0.0
    %1493 = vmatpush1.msra.mxu0 0.0
    %1494 = vmatprep.subr.mxu0 0.0
    %1495 = vmatpush1.msra.mxu0 0.0
    %1496 = vmatprep.subr.mxu0 0.0
    %1497 = vmatpush1.msra.mxu0 0.0
    %1498 = vmatprep.subr.mxu0 0.0
    %1499 = vmatpush1.msra.mxu0 0.0
    %1500 = vmatprep.subr.mxu0 0.0
    %1501 = vmatpush1.msra.mxu0 0.0
    %1502 = vmatprep.subr.mxu0 0.0
    %1503 = vmatpush1.msra.mxu0 0.0
    %1504 = vmatprep.mubr.f32.mxu0 0.0
    %1505 = vmatmul.mubr.f32.gmra.mrb[0].mxu0 %v1435
    %v1506 = vpop.f32.mrb[0].mxu0
    %v1507 = vadd.f32 0.0, %v1506
    %v1508 = vpop.f32.mrb[0].mxu0
    %v1509 = vadd.f32 0.0, %v1508
    %1510 = vdwg.mxu0
    %1511 = vmatprep.subr.mxu0 0.0
    %1512 = vmatpush1.msra.mxu0 %v392
    %1513 = vmatprep.subr.mxu0 0.0
    %1514 = vmatpush1.msra.mxu0 %v395
    %1515 = vmatprep.subr.mxu0 0.0
    %1516 = vmatpush1.msra.mxu0 %v398
    %1517 = vmatprep.subr.mxu0 0.0
    %1518 = vmatpush1.msra.mxu0 %v401
    %1519 = vmatprep.subr.mxu0 0.0
    %1520 = vmatpush1.msra.mxu0 %v404
    %1521 = vmatprep.subr.mxu0 0.0
    %1522 = vmatpush1.msra.mxu0 %v407
    %1523 = vmatprep.subr.mxu0 0.0
    %1524 = vmatpush1.msra.mxu0 %v410
    %1525 = vmatprep.subr.mxu0 0.0
    %1526 = vmatpush1.msra.mxu0 %v413
    %1527 = vmatprep.subr.mxu0 0.0
    %1528 = vmatpush1.msra.mxu0 %v416
    %1529 = vmatprep.subr.mxu0 0.0
    %1530 = vmatpush1.msra.mxu0 %v419
    %1531 = vmatprep.subr.mxu0 0.0
    %1532 = vmatpush1.msra.mxu0 %v422
    %1533 = vmatprep.subr.mxu0 0.0
    %1534 = vmatpush1.msra.mxu0 %v425
    %1535 = vmatprep.subr.mxu0 0.0
    %1536 = vmatpush1.msra.mxu0 %v428
    %1537 = vmatprep.subr.mxu0 0.0
    %1538 = vmatpush1.msra.mxu0 %v431
    %1539 = vmatprep.subr.mxu0 0.0
    %1540 = vmatpush1.msra.mxu0 %v434
    %1541 = vmatprep.subr.mxu0 0.0
    %1542 = vmatpush1.msra.mxu0 %v437
    %1543 = vmatprep.subr.mxu0 0.0
    %1544 = vmatpush1.msra.mxu0 0.0
    %1545 = vmatprep.subr.mxu0 0.0
    %1546 = vmatpush1.msra.mxu0 0.0
    %1547 = vmatprep.subr.mxu0 0.0
    %1548 = vmatpush1.msra.mxu0 0.0
    %1549 = vmatprep.subr.mxu0 0.0
    %1550 = vmatpush1.msra.mxu0 0.0
    %1551 = vmatprep.subr.mxu0 0.0
    %1552 = vmatpush1.msra.mxu0 0.0
    %1553 = vmatprep.subr.mxu0 0.0
    %1554 = vmatpush1.msra.mxu0 0.0
    %1555 = vmatprep.subr.mxu0 0.0
    %1556 = vmatpush1.msra.mxu0 0.0
    %1557 = vmatprep.subr.mxu0 0.0
    %1558 = vmatpush1.msra.mxu0 0.0
    %1559 = vmatprep.subr.mxu0 0.0
    %1560 = vmatpush1.msra.mxu0 0.0
    %1561 = vmatprep.subr.mxu0 0.0
    %1562 = vmatpush1.msra.mxu0 0.0
    %1563 = vmatprep.subr.mxu0 0.0
    %1564 = vmatpush1.msra.mxu0 0.0
    %1565 = vmatprep.subr.mxu0 0.0
    %1566 = vmatpush1.msra.mxu0 0.0
    %1567 = vmatprep.subr.mxu0 0.0
    %1568 = vmatpush1.msra.mxu0 0.0
    %1569 = vmatprep.subr.mxu0 0.0
    %1570 = vmatpush1.msra.mxu0 0.0
    %1571 = vmatprep.subr.mxu0 0.0
    %1572 = vmatpush1.msra.mxu0 0.0
    %1573 = vmatprep.subr.mxu0 0.0
    %1574 = vmatpush1.msra.mxu0 0.0
    %1575 = vmatprep.mubr.f32.mxu0 0.0
    %1576 = vmatmul.mubr.f32.gmra.mrb[0].mxu0 %v1435
    %v1577 = vpop.f32.mrb[0].mxu0
    %v1578 = vadd.f32 0.0, %v1577
    %v1579 = vpop.f32.mrb[0].mxu0
    %1580 = vdwg.mxu0
    %v1581 = vadd.f32 %v1437, %v1507
    %v1582 = vxor.u32 %v1581, 2147483648
    %v1583 = vmul.f32 %v1582, 1.442695
    %v1584 = vpow.pop %v1583
    %v1585 = vadd.f32 %v1584, 1.0
    %v1586 = vrcp.pop %v1585
    %v1587 = vmul.f32 1.0, %v1586
    %v1588 = vadd.f32 %v1438, %v1509
    %v1589 = vxor.u32 %v1588, 2147483648
    %v1590 = vmul.f32 %v1589, 1.442695
    %v1591 = vpow.pop %v1590
    %v1592 = vadd.f32 %v1591, 1.0
    %v1593 = vrcp.pop %v1592
    %v1594 = vmul.f32 1.0, %v1593
    %v1595 = vadd.f32 %v1578, %v385
    %v1596 = vmul.f32 %v1587, %v1595
    %v1597 = vadd.f32 %v1439, %v1596
    %v1598 = vtanh.pop %v1597
    %v1599 = vsub.f32 1.0, %v1594
    %v1600 = vmul.f32 %v1599, %v1598
    %v1601 = vmul.f32 %v1594, %v1435
    %v1602 = vadd.f32 %v1600, %v1601
    %s1603 = scalar_lea.vmem [#allocation2], 168
    %v1604 = vld [vmem:[%s1603] sm:$0xff]
    %v1605 = vld [vmem:[%s1603 + $0x8] sm:$0xff]
    %v1606 = vld [vmem:[%s1603 + $0x10] sm:$0xff]
    %1607 = vmatprep.subr.mxu0 %v391
    %1608 = vmatpush1.msra.mxu0 %v390
    %1609 = vmatprep.subr.mxu0 %v394
    %1610 = vmatpush1.msra.mxu0 %v393
    %1611 = vmatprep.subr.mxu0 %v397
    %1612 = vmatpush1.msra.mxu0 %v396
    %1613 = vmatprep.subr.mxu0 %v400
    %1614 = vmatpush1.msra.mxu0 %v399
    %1615 = vmatprep.subr.mxu0 %v403
    %1616 = vmatpush1.msra.mxu0 %v402
    %1617 = vmatprep.subr.mxu0 %v406
    %1618 = vmatpush1.msra.mxu0 %v405
    %1619 = vmatprep.subr.mxu0 %v409
    %1620 = vmatpush1.msra.mxu0 %v408
    %1621 = vmatprep.subr.mxu0 %v412
    %1622 = vmatpush1.msra.mxu0 %v411
    %1623 = vmatprep.subr.mxu0 %v415
    %1624 = vmatpush1.msra.mxu0 %v414
    %1625 = vmatprep.subr.mxu0 %v418
    %1626 = vmatpush1.msra.mxu0 %v417
    %1627 = vmatprep.subr.mxu0 %v421
    %1628 = vmatpush1.msra.mxu0 %v420
    %1629 = vmatprep.subr.mxu0 %v424
    %1630 = vmatpush1.msra.mxu0 %v423
    %1631 = vmatprep.subr.mxu0 %v427
    %1632 = vmatpush1.msra.mxu0 %v426
    %1633 = vmatprep.subr.mxu0 %v430
    %1634 = vmatpush1.msra.mxu0 %v429
    %1635 = vmatprep.subr.mxu0 %v433
    %1636 = vmatpush1.msra.mxu0 %v432
    %1637 = vmatprep.subr.mxu0 %v436
    %1638 = vmatpush1.msra.mxu0 %v435
    %1639 = vmatprep.subr.mxu0 0.0
    %1640 = vmatpush1.msra.mxu0 0.0
    %1641 = vmatprep.subr.mxu0 0.0
    %1642 = vmatpush1.msra.mxu0 0.0
    %1643 = vmatprep.subr.mxu0 0.0
    %1644 = vmatpush1.msra.mxu0 0.0
    %1645 = vmatprep.subr.mxu0 0.0
    %1646 = vmatpush1.msra.mxu0 0.0
    %1647 = vmatprep.subr.mxu0 0.0
    %1648 = vmatpush1.msra.mxu0 0.0
    %1649 = vmatprep.subr.mxu0 0.0
    %1650 = vmatpush1.msra.mxu0 0.0
    %1651 = vmatprep.subr.mxu0 0.0
    %1652 = vmatpush1.msra.mxu0 0.0
    %1653 = vmatprep.subr.mxu0 0.0
    %1654 = vmatpush1.msra.mxu0 0.0
    %1655 = vmatprep.subr.mxu0 0.0
    %1656 = vmatpush1.msra.mxu0 0.0
    %1657 = vmatprep.subr.mxu0 0.0
    %1658 = vmatpush1.msra.mxu0 0.0
    %1659 = vmatprep.subr.mxu0 0.0
    %1660 = vmatpush1.msra.mxu0 0.0
    %1661 = vmatprep.subr.mxu0 0.0
    %1662 = vmatpush1.msra.mxu0 0.0
    %1663 = vmatprep.subr.mxu0 0.0
    %1664 = vmatpush1.msra.mxu0 0.0
    %1665 = vmatprep.subr.mxu0 0.0
    %1666 = vmatpush1.msra.mxu0 0.0
    %1667 = vmatprep.subr.mxu0 0.0
    %1668 = vmatpush1.msra.mxu0 0.0
    %1669 = vmatprep.subr.mxu0 0.0
    %1670 = vmatpush1.msra.mxu0 0.0
    %1671 = vmatprep.mubr.f32.mxu0 0.0
    %1672 = vmatmul.mubr.f32.gmra.mrb[0].mxu0 %v1602
    %v1673 = vpop.f32.mrb[0].mxu0
    %v1674 = vadd.f32 0.0, %v1673
    %v1675 = vpop.f32.mrb[0].mxu0
    %v1676 = vadd.f32 0.0, %v1675
    %1677 = vdwg.mxu0
    %1678 = vmatprep.subr.mxu0 0.0
    %1679 = vmatpush1.msra.mxu0 %v392
    %1680 = vmatprep.subr.mxu0 0.0
    %1681 = vmatpush1.msra.mxu0 %v395
    %1682 = vmatprep.subr.mxu0 0.0
    %1683 = vmatpush1.msra.mxu0 %v398
    %1684 = vmatprep.subr.mxu0 0.0
    %1685 = vmatpush1.msra.mxu0 %v401
    %1686 = vmatprep.subr.mxu0 0.0
    %1687 = vmatpush1.msra.mxu0 %v404
    %1688 = vmatprep.subr.mxu0 0.0
    %1689 = vmatpush1.msra.mxu0 %v407
    %1690 = vmatprep.subr.mxu0 0.0
    %1691 = vmatpush1.msra.mxu0 %v410
    %1692 = vmatprep.subr.mxu0 0.0
    %1693 = vmatpush1.msra.mxu0 %v413
    %1694 = vmatprep.subr.mxu0 0.0
    %1695 = vmatpush1.msra.mxu0 %v416
    %1696 = vmatprep.subr.mxu0 0.0
    %1697 = vmatpush1.msra.mxu0 %v419
    %1698 = vmatprep.subr.mxu0 0.0
    %1699 = vmatpush1.msra.mxu0 %v422
    %1700 = vmatprep.subr.mxu0 0.0
    %1701 = vmatpush1.msra.mxu0 %v425
    %1702 = vmatprep.subr.mxu0 0.0
    %1703 = vmatpush1.msra.mxu0 %v428
    %1704 = vmatprep.subr.mxu0 0.0
    %1705 = vmatpush1.msra.mxu0 %v431
    %1706 = vmatprep.subr.mxu0 0.0
    %1707 = vmatpush1.msra.mxu0 %v434
    %1708 = vmatprep.subr.mxu0 0.0
    %1709 = vmatpush1.msra.mxu0 %v437
    %1710 = vmatprep.subr.mxu0 0.0
    %1711 = vmatpush1.msra.mxu0 0.0
    %1712 = vmatprep.subr.mxu0 0.0
    %1713 = vmatpush1.msra.mxu0 0.0
    %1714 = vmatprep.subr.mxu0 0.0
    %1715 = vmatpush1.msra.mxu0 0.0
    %1716 = vmatprep.subr.mxu0 0.0
    %1717 = vmatpush1.msra.mxu0 0.0
    %1718 = vmatprep.subr.mxu0 0.0
    %1719 = vmatpush1.msra.mxu0 0.0
    %1720 = vmatprep.subr.mxu0 0.0
    %1721 = vmatpush1.msra.mxu0 0.0
    %1722 = vmatprep.subr.mxu0 0.0
    %1723 = vmatpush1.msra.mxu0 0.0
    %1724 = vmatprep.subr.mxu0 0.0
    %1725 = vmatpush1.msra.mxu0 0.0
    %1726 = vmatprep.subr.mxu0 0.0
    %1727 = vmatpush1.msra.mxu0 0.0
    %1728 = vmatprep.subr.mxu0 0.0
    %1729 = vmatpush1.msra.mxu0 0.0
    %1730 = vmatprep.subr.mxu0 0.0
    %1731 = vmatpush1.msra.mxu0 0.0
    %1732 = vmatprep.subr.mxu0 0.0
    %1733 = vmatpush1.msra.mxu0 0.0
    %1734 = vmatprep.subr.mxu0 0.0
    %1735 = vmatpush1.msra.mxu0 0.0
    %1736 = vmatprep.subr.mxu0 0.0
    %1737 = vmatpush1.msra.mxu0 0.0
    %1738 = vmatprep.subr.mxu0 0.0
    %1739 = vmatpush1.msra.mxu0 0.0
    %1740 = vmatprep.subr.mxu0 0.0
    %1741 = vmatpush1.msra.mxu0 0.0
    %1742 = vmatprep.mubr.f32.mxu0 0.0
    %1743 = vmatmul.mubr.f32.gmra.mrb[0].mxu0 %v1602
    %v1744 = vpop.f32.mrb[0].mxu0
    %v1745 = vadd.f32 0.0, %v1744
    %v1746 = vpop.f32.mrb[0].mxu0
    %1747 = vdwg.mxu0
    %v1748 = vadd.f32 %v1604, %v1674
    %v1749 = vxor.u32 %v1748, 2147483648
    %v1750 = vmul.f32 %v1749, 1.442695
    %v1751 = vpow.pop %v1750
    %v1752 = vadd.f32 %v1751, 1.0
    %v1753 = vrcp.pop %v1752
    %v1754 = vmul.f32 1.0, %v1753
    %v1755 = vadd.f32 %v1605, %v1676
    %v1756 = vxor.u32 %v1755, 2147483648
    %v1757 = vmul.f32 %v1756, 1.442695
    %v1758 = vpow.pop %v1757
    %v1759 = vadd.f32 %v1758, 1.0
    %v1760 = vrcp.pop %v1759
    %v1761 = vmul.f32 1.0, %v1760
    %v1762 = vadd.f32 %v1745, %v385
    %v1763 = vmul.f32 %v1754, %v1762
    %v1764 = vadd.f32 %v1606, %v1763
    %v1765 = vtanh.pop %v1764
    %v1766 = vsub.f32 1.0, %v1761
    %v1767 = vmul.f32 %v1766, %v1765
    %v1768 = vmul.f32 %v1761, %v1602
    %v1769 = vadd.f32 %v1767, %v1768
    %v1770 = vld [vmem:[#allocation9] sm:$0xff]
    %v1771 = vld [vmem:[#allocation9 + $0x8] sm:$0xff]
    %v1772 = vld [vmem:[#allocation9 + $0x10] sm:$0xff]
    %v1773 = vld [vmem:[#allocation9 + $0x18] sm:$0xff]
    %v1774 = vld [vmem:[#allocation9 + $0x20] sm:$0xff]
    %v1775 = vld [vmem:[#allocation9 + $0x28] sm:$0xff]
    %v1776 = vld [vmem:[#allocation9 + $0x30] sm:$0xff]
    %v1777 = vld [vmem:[#allocation9 + $0x38] sm:$0xff]
    %v1778 = vld [vmem:[#allocation9 + $0x40] sm:$0xff]
    %v1779 = vld [vmem:[#allocation9 + $0x48] sm:$0xff]
    %v1780 = vld [vmem:[#allocation9 + $0x50] sm:$0xff]
    %v1781 = vld [vmem:[#allocation9 + $0x58] sm:$0xff]
    %v1782 = vld [vmem:[#allocation9 + $0x60] sm:$0xff]
    %v1783 = vld [vmem:[#allocation9 + $0x68] sm:$0xff]
    %v1784 = vld [vmem:[#allocation9 + $0x70] sm:$0xff]
    %v1785 = vld [vmem:[#allocation9 + $0x78] sm:$0xff]
    %v1786 = vld [vmem:[%s6] sm:$0x1]
    %v1788 = vlaneseq
    %v1789 = vshrl.u32 %v1788, 7
    %v1790 = vsub.s32 0, %v1789
    %v1791 = vrot.slane %v1786, %v1790
    %1793 = vmatprep.subr.mxu0 0.0
    %1794 = vmatpush1.msra.mxu0 %v1770
    %1795 = vmatprep.subr.mxu0 0.0
    %1796 = vmatpush1.msra.mxu0 %v1771
    %1797 = vmatprep.subr.mxu0 0.0
    %1798 = vmatpush1.msra.mxu0 %v1772
    %1799 = vmatprep.subr.mxu0 0.0
    %1800 = vmatpush1.msra.mxu0 %v1773
    %1801 = vmatprep.subr.mxu0 0.0
    %1802 = vmatpush1.msra.mxu0 %v1774
    %1803 = vmatprep.subr.mxu0 0.0
    %1804 = vmatpush1.msra.mxu0 %v1775
    %1805 = vmatprep.subr.mxu0 0.0
    %1806 = vmatpush1.msra.mxu0 %v1776
    %1807 = vmatprep.subr.mxu0 0.0
    %1808 = vmatpush1.msra.mxu0 %v1777
    %1809 = vmatprep.subr.mxu0 0.0
    %1810 = vmatpush1.msra.mxu0 %v1778
    %1811 = vmatprep.subr.mxu0 0.0
    %1812 = vmatpush1.msra.mxu0 %v1779
    %1813 = vmatprep.subr.mxu0 0.0
    %1814 = vmatpush1.msra.mxu0 %v1780
    %1815 = vmatprep.subr.mxu0 0.0
    %1816 = vmatpush1.msra.mxu0 %v1781
    %1817 = vmatprep.subr.mxu0 0.0
    %1818 = vmatpush1.msra.mxu0 %v1782
    %1819 = vmatprep.subr.mxu0 0.0
    %1820 = vmatpush1.msra.mxu0 %v1783
    %1821 = vmatprep.subr.mxu0 0.0
    %1822 = vmatpush1.msra.mxu0 %v1784
    %1823 = vmatprep.subr.mxu0 0.0
    %1824 = vmatpush1.msra.mxu0 %v1785
    %1825 = vmatprep.subr.mxu0 0.0
    %1826 = vmatpush1.msra.mxu0 0.0
    %1827 = vmatprep.subr.mxu0 0.0
    %1828 = vmatpush1.msra.mxu0 0.0
    %1829 = vmatprep.subr.mxu0 0.0
    %1830 = vmatpush1.msra.mxu0 0.0
    %1831 = vmatprep.subr.mxu0 0.0
    %1832 = vmatpush1.msra.mxu0 0.0
    %1833 = vmatprep.subr.mxu0 0.0
    %1834 = vmatpush1.msra.mxu0 0.0
    %1835 = vmatprep.subr.mxu0 0.0
    %1836 = vmatpush1.msra.mxu0 0.0
    %1837 = vmatprep.subr.mxu0 0.0
    %1838 = vmatpush1.msra.mxu0 0.0
    %1839 = vmatprep.subr.mxu0 0.0
    %1840 = vmatpush1.msra.mxu0 0.0
    %1841 = vmatprep.subr.mxu0 0.0
    %1842 = vmatpush1.msra.mxu0 0.0
    %1843 = vmatprep.subr.mxu0 0.0
    %1844 = vmatpush1.msra.mxu0 0.0
    %1845 = vmatprep.subr.mxu0 0.0
    %1846 = vmatpush1.msra.mxu0 0.0
    %1847 = vmatprep.subr.mxu0 0.0
    %1848 = vmatpush1.msra.mxu0 0.0
    %1849 = vmatprep.subr.mxu0 0.0
    %1850 = vmatpush1.msra.mxu0 0.0
    %1851 = vmatprep.subr.mxu0 0.0
    %1852 = vmatpush1.msra.mxu0 0.0
    %1853 = vmatprep.subr.mxu0 0.0
    %1854 = vmatpush1.msra.mxu0 0.0
    %1855 = vmatprep.subr.mxu0 0.0
    %1856 = vmatpush1.msra.mxu0 0.0
    %1857 = vmatprep.mubr.f32.mxu0 0.0
    %1858 = vmatmul.mubr.f32.gmra.mrb[0].mxu0 %v1769
    %v1859 = vpop.f32.mrb[0].mxu0
    %v1860 = vadd.f32 %v1791, %v1859
    %v1861 = vpop.f32.mrb[0].mxu0
    %1862 = vdwg.mxu0
    %1863 = vst [vmem:[#allocation11] sm:$0xff] %v1860
    // Predicated region
    $region46: #{tpu_custom_call.1} parent=1 // pred_check
      _
    $region47: #{tpu_custom_call.1} parent=1 // pred_check_branch
      %1865 = sbr.rel (0) target = $region49
    $region48: #{tpu_custom_call.1} parent=1 // pred_region
      %s1867 = ssub.s32 128, 128
      %1868 = vsyncadd [#allocation5], %s1867
      %s1870 = sshll.u32 [#allocation11], 4
      %s1871 = int_to_ptr.vmem [resolvable:$true] %s1870
      %1873 = dma.vmem_to_hbm [thread:$0]  %s1871, 128, %s7, [#allocation5]
    $region49: #{tpu_custom_call.1} parent=1 // pred_fallthru
      _
    // Predicated region
    $region50: #{tpu_custom_call.1} parent=1 // pred_check
      _
    $region51: #{tpu_custom_call.1} parent=1 // pred_check_branch
      %1875 = sbr.rel (0) target = $region53
    $region52: #{tpu_custom_call.1} parent=1 // pred_region
      %1876 = dma.done [#allocation5], 128
    $region53: #{tpu_custom_call.1} parent=1 // pred_fallthru
      _
    %1877 = vsyncpa [#allocation4], 1
    %1878 = vsyncpa [#allocation7], 1
    %1879 = vsyncpa [#allocation10], 1
    %1880 = vsyncpa [#allocation5], 1

</llo_original>
